<compile_context>
chip_gen: v7x
topology: tpu7x:2x2x1
jax: 0.10.0
libtpu: 0.0.40
codegen_flags: <defaults>
</compile_context>

<pallas_src>
import math
from functools import partial

import jax
import jax.numpy as jnp
from jax import lax
from jax.experimental import pallas as pl
from jax.experimental.pallas import tpu as pltpu


def _attn_prop_kernel(num_heads,
                      x_ref, s_ref,
                      wq_ref, bq_ref, wkv_ref, bkv_ref,
                      w1x_ref, w1o_ref, b1_ref, w2_ref, b2_ref,
                      o_ref):
    """One grid step == one batch element (everything in NCW layout).

    x_ref : (1, D, N)      s_ref : (1, D, M)
    wq : (D, D)   bq : (D, 1)        (head-major rows, 1/sqrt(hd) folded in)
    wkv: (2D, D)  bkv: (2D, 1)       (K rows then V rows, head-major)
    w1x: (2D, D)  w1o: (2D, D)  b1: (2D, 1)   (merge conv + concat folded in)
    w2 : (D, 2D)  b2 : (D, 1)
    o_ref : (1, D, N)
    """
    f32 = jnp.float32
    D = x_ref.shape[1]
    hd = D // num_heads
    mm = wq_ref.dtype                       # matmul-operand dtype (f32 or bf16)

    x = x_ref[0]                            # (D, N) f32
    s = s_ref[0]                            # (D, M) f32
    xm = x.astype(mm)
    sm = s.astype(mm)

    # --- fused projections (attention scale already folded into wq/bq) ---
    q = jnp.dot(wq_ref[...], xm, preferred_element_type=f32) + bq_ref[...]     # (D, N)
    kv = jnp.dot(wkv_ref[...], sm, preferred_element_type=f32) + bkv_ref[...]  # (2D, M)

    # --- head split: channels are head-major (h*hd + d) -> pure reshape ---
    qh = jnp.swapaxes(q.reshape(num_heads, hd, -1), 1, 2)          # (H, N, hd)
    kh = jnp.swapaxes(kv[:D].reshape(num_heads, hd, -1), 1, 2)     # (H, M, hd)
    vh = jnp.swapaxes(kv[D:].reshape(num_heads, hd, -1), 1, 2)     # (H, M, hd)

    # --- scaled dot-product attention, softmax over source positions ---
    # TODO(synk): for production SuperGlue sizes (D=256, N~2k) on v7x (64 MiB
    # VMEM) the (H, N, M) score tensor should be streamed flash-style over an
    # M grid axis; at these shapes everything fits comfortably in VMEM.
    scores = jnp.einsum('hnd,hmd->hnm', qh.astype(mm), kh.astype(mm),
                        preferred_element_type=f32)                # (H, N, M)
    scores = scores - jnp.max(scores, axis=-1, keepdims=True)
    p = jnp.exp(scores)
    l = jnp.sum(p, axis=-1, keepdims=True)                         # (H, N, 1)
    o = jnp.einsum('hnm,hmd->hnd', p.astype(mm), vh.astype(mm),
                   preferred_element_type=f32)                     # (H, N, hd)
    # Normalize after P.V: one reciprocal per row + a multiply on the small
    # (H, N, hd) tensor instead of dividing the large (H, N, M) one.
    o = o * pl.reciprocal(l, approx=bool(mm == jnp.bfloat16))

    # back to channel-major (head-major rows) for the fused MLP matmul
    o_dn = jnp.swapaxes(o, 1, 2).reshape(D, -1)                    # (D, N)

    # --- MLP layer 1 (merge conv + concat folded into the weights) ---
    h1 = (jnp.dot(w1x_ref[...], xm, preferred_element_type=f32)
          + jnp.dot(w1o_ref[...], o_dn.astype(mm), preferred_element_type=f32)
          + b1_ref[...])                                           # (2D, N)

    # InstanceNorm1d (affine=False, eps=1e-5): per-channel over spatial N,
    # biased variance — kept in f32.
    mean = jnp.mean(h1, axis=1, keepdims=True)
    var = jnp.mean((h1 - mean) ** 2, axis=1, keepdims=True)
    h1 = (h1 - mean) * lax.rsqrt(var + 1e-5)
    h1 = jnp.maximum(h1, 0.0)

    out = jnp.dot(w2_ref[...], h1.astype(mm), preferred_element_type=f32) + b2_ref[...]
    o_ref[0] = out.astype(o_ref.dtype)


def attentional_propagation(x_bcn, src_bcn, params, num_heads, use_bf16=False):
    """x_bcn: (B, D, N), src_bcn: (B, D, M) -> (B, D, N), PyTorch NCW layout."""
    B, D, N = x_bcn.shape
    M = src_bcn.shape[2]
    H = num_heads
    hd = D // H
    (Wq, bq, Wk, bk, Wv, bv, Wm, bm, W1, b1, W2, b2) = params

    f32 = jnp.float32
    mm_dtype = jnp.bfloat16 if use_bf16 else f32
    inv_scale = 1.0 / math.sqrt(hd)
    hi = lax.Precision.HIGHEST  # exact one-time weight folding

    # PyTorch head split: output channel c = d*H + h (from .view(B, hd, H, N)).
    # Reorder projection rows to head-major (h*hd + d) so the in-kernel head
    # split is a contiguous reshape.
    def head_major_rows(W):      # (D, Din): new row h*hd+d = old row d*H+h
        return jnp.reshape(jnp.transpose(jnp.reshape(W, (hd, H, -1)), (1, 0, 2)), (D, -1))

    def head_major_vec(v):       # (D,)
        return jnp.reshape(jnp.transpose(jnp.reshape(v, (hd, H)), (1, 0)), (D,))

    wq = head_major_rows(Wq) * inv_scale          # fold attention scale
    bq_ = head_major_vec(bq) * inv_scale
    wkv = jnp.concatenate([head_major_rows(Wk), head_major_rows(Wv)], axis=0)  # (2D, D)
    bkv = jnp.concatenate([head_major_vec(bk), head_major_vec(bv)], axis=0)    # (2D,)

    # Merge Conv1d expects input channel c = d*H + h; reorder its columns to
    # head-major and fold it (plus the concat) into the first MLP layer.
    wm_hm = jnp.reshape(jnp.transpose(jnp.reshape(Wm, (D, hd, H)), (0, 2, 1)), (D, D))
    w1x = W1[:, :D]                                       # acts on x
    w1m = W1[:, D:]                                       # acts on message
    w1o = jnp.matmul(w1m, wm_hm, precision=hi)            # (2D, D): merge folded
    b1_ = b1 + jnp.matmul(w1m, bm[:, None], precision=hi)[:, 0]   # (2D,)

    def as_mm(w):
        return w.astype(mm_dtype)

    def col(v):                                           # (C,) -> (C, 1), f32 bias
        return v.astype(f32)[:, None]

    args = (x_bcn.astype(f32), src_bcn.astype(f32),
            as_mm(wq), col(bq_), as_mm(wkv), col(bkv),
            as_mm(w1x), as_mm(w1o), col(b1_), as_mm(W2), col(b2))

    def full_spec(a):
        nd = a.ndim
        return pl.BlockSpec(a.shape, lambda b, nd=nd: (0,) * nd)

    in_specs = [
        pl.BlockSpec((1, D, N), lambda b: (b, 0, 0)),
        pl.BlockSpec((1, D, M), lambda b: (b, 0, 0)),
    ] + [full_spec(a) for a in args[2:]]

    out = pl.pallas_call(
        partial(_attn_prop_kernel, H),
        out_shape=jax.ShapeDtypeStruct((B, D, N), f32),
        grid_spec=pltpu.PrefetchScalarGridSpec(
            num_scalar_prefetch=0,
            # One batch element per grid step; "parallel" lets both v7x
            # TensorCores work for B >= 2.  (For B == 1 at production sizes,
            # add a parallel tile axis over N.)
            grid=(B,),
            in_specs=in_specs,
            out_specs=pl.BlockSpec((1, D, N), lambda b: (b, 0, 0)),
        ),
        compiler_params=pltpu.CompilerParams(dimension_semantics=("parallel",)),
    )(*args)

    return out                                   # already (B, D, N): no transpose


# ----------------------- pure-JAX reference (PyTorch semantics) -----------------------
def _ref_forward(x_bcn, s_bcn, params, num_heads):
    (Wq, bq, Wk, bk, Wv, bv, Wm, bm, W1, b1, W2, b2) = params
    B, D, N = x_bcn.shape
    H = num_heads
    hd = D // H

    def conv(x, W, b):   # Conv1d kernel_size=1
        return jnp.einsum('oc,bcn->bon', W, x) + b[None, :, None]

    q = conv(x_bcn, Wq, bq).reshape(B, hd, H, -1)
    k = conv(s_bcn, Wk, bk).reshape(B, hd, H, -1)
    v = conv(s_bcn, Wv, bv).reshape(B, hd, H, -1)
    scores = jnp.einsum('bdhn,bdhm->bhnm', q, k) / (hd ** 0.5)
    prob = jax.nn.softmax(scores, axis=-1)
    o = jnp.einsum('bhnm,bdhm->bdhn', prob, v)
    msg = conv(o.reshape(B, D, -1), Wm, bm)

    cat = jnp.concatenate([x_bcn, msg], axis=1)
    h1 = conv(cat, W1, b1)
    mean = jnp.mean(h1, axis=2, keepdims=True)
    var = jnp.var(h1, axis=2, keepdims=True)      # biased, like InstanceNorm1d
    h1n = (h1 - mean) / jnp.sqrt(var + 1e-5)
    return conv(jnp.maximum(h1n, 0.0), W2, b2)


def _init_params(key, D):
    ks = jax.random.split(key, 11)

    def w(k, o, i):
        return (jax.random.normal(k, (o, i), jnp.float32) / math.sqrt(i))

    def b(k, o):
        return jax.random.normal(k, (o,), jnp.float32) * 0.02

    Wq, bq = w(ks[0], D, D), b(ks[1], D)
    Wk, bk = w(ks[2], D, D), b(ks[3], D)
    Wv, bv = w(ks[4], D, D), b(ks[5], D)
    Wm, bm = w(ks[6], D, D), b(ks[7], D)
    W1, b1 = w(ks[8], 2 * D, 2 * D), b(ks[9], 2 * D)
    W2 = w(ks[10], D, 2 * D)
    b2 = jnp.zeros((D,), jnp.float32)   # nn.init.constant_(self.mlp[-1].bias, 0.0)
    return (Wq, bq, Wk, bk, Wv, bv, Wm, bm, W1, b1, W2, b2)


if __name__ == "__main__":
    B, D, H = 2, 32, 4          # feature_dim=32, num_heads=4
    N, M = 8, 16                # x has N positions, source has M positions

    root = jax.random.PRNGKey(0)
    kx, ks, kp = jax.random.split(root, 3)
    x = jax.random.normal(kx, (B, D, N), jnp.float32)       # PyTorch layout (B, C, N)
    source = jax.random.normal(ks, (B, D, M), jnp.float32)
    params = _init_params(kp, D)

    ref = _ref_forward(x, source, params, H)

    # f32 matmul-operand path: tight check against the pure-JAX reference.
    out = jax.block_until_ready(attentional_propagation(x, source, params, H))
    assert out.shape == (B, D, N)
    assert bool(jnp.allclose(out, ref, rtol=1e-3, atol=1e-3)), "f32 mismatch vs reference"

    # bf16 matmul-operand / f32-accumulate path: looser sanity check.
    out_bf16 = jax.block_until_ready(
        attentional_propagation(x, source, params, H, use_bf16=True))
    assert bool(jnp.allclose(out_bf16, ref, rtol=1e-1, atol=1e-1)), "bf16 mismatch vs reference"

    print("KERNEL_OK")
</pallas_src>

<mosaic_0001>
module attributes {stable_mosaic.version = 11 : i64} {
  func.func @_attn_prop_kernel(%arg0: i32, %arg1: memref<1x32x8xf32, #tpu.memory_space<vmem>>, %arg2: memref<1x32x16xf32, #tpu.memory_space<vmem>>, %arg3: memref<32x32xf32, #tpu.memory_space<vmem>>, %arg4: memref<32x1xf32, #tpu.memory_space<vmem>>, %arg5: memref<64x32xf32, #tpu.memory_space<vmem>>, %arg6: memref<64x1xf32, #tpu.memory_space<vmem>>, %arg7: memref<64x32xf32, #tpu.memory_space<vmem>>, %arg8: memref<64x32xf32, #tpu.memory_space<vmem>>, %arg9: memref<64x1xf32, #tpu.memory_space<vmem>>, %arg10: memref<32x64xf32, #tpu.memory_space<vmem>>, %arg11: memref<32x1xf32, #tpu.memory_space<vmem>>, %arg12: memref<1x32x8xf32, #tpu.memory_space<vmem>>) attributes {dimension_semantics = [#tpu.dimension_semantics<parallel>], iteration_bounds = array<i64: 2>, scalar_prefetch = 0 : i64, scratch_operands = 0 : i64, tpu.core_type = #tpu.core_type<tc>, window_params = [{transform_indices = @transform_0, window_bounds = array<i64: 1, 32, 8>}, {transform_indices = @transform_1, window_bounds = array<i64: 1, 32, 16>}, {pipeline_mode = #tpu.pipeline_mode<synchronous>, transform_indices = @transform_2, window_bounds = array<i64: 32, 32>}, {pipeline_mode = #tpu.pipeline_mode<synchronous>, transform_indices = @transform_3, window_bounds = array<i64: 32, 1>}, {pipeline_mode = #tpu.pipeline_mode<synchronous>, transform_indices = @transform_4, window_bounds = array<i64: 64, 32>}, {pipeline_mode = #tpu.pipeline_mode<synchronous>, transform_indices = @transform_5, window_bounds = array<i64: 64, 1>}, {pipeline_mode = #tpu.pipeline_mode<synchronous>, transform_indices = @transform_6, window_bounds = array<i64: 64, 32>}, {pipeline_mode = #tpu.pipeline_mode<synchronous>, transform_indices = @transform_7, window_bounds = array<i64: 64, 32>}, {pipeline_mode = #tpu.pipeline_mode<synchronous>, transform_indices = @transform_8, window_bounds = array<i64: 64, 1>}, {pipeline_mode = #tpu.pipeline_mode<synchronous>, transform_indices = @transform_9, window_bounds = array<i64: 32, 64>}, {pipeline_mode = #tpu.pipeline_mode<synchronous>, transform_indices = @transform_10, window_bounds = array<i64: 32, 1>}, {transform_indices = @transform_11, window_bounds = array<i64: 1, 32, 8>}]} {
    %c0 = arith.constant 0 : index
    %c0_0 = arith.constant 0 : index
    %c0_1 = arith.constant 0 : index
    %0 = vector.load %arg1[%c0, %c0_0, %c0_1] : memref<1x32x8xf32, #tpu.memory_space<vmem>>, vector<1x32x8xf32>
    %1 = vector.shape_cast %0 : vector<1x32x8xf32> to vector<32x8xf32>
    %c0_2 = arith.constant 0 : index
    %c0_3 = arith.constant 0 : index
    %c0_4 = arith.constant 0 : index
    %2 = vector.load %arg2[%c0_2, %c0_3, %c0_4] : memref<1x32x16xf32, #tpu.memory_space<vmem>>, vector<1x32x16xf32>
    %3 = vector.shape_cast %2 : vector<1x32x16xf32> to vector<32x16xf32>
    %c0_5 = arith.constant 0 : index
    %c0_6 = arith.constant 0 : index
    %4 = vector.load %arg3[%c0_5, %c0_6] : memref<32x32xf32, #tpu.memory_space<vmem>>, vector<32x32xf32>
    %cst = arith.constant dense<0.000000e+00> : vector<32x8xf32>
    %5 = tpu.matmul %4, %1, %cst {dimension_numbers = #tpu.dot_dimension_numbers<[1], [0], [0], [1], [0, 0, 1, 1], [], []>} : vector<32x32xf32>, vector<32x8xf32>, vector<32x8xf32> -> vector<32x8xf32>
    %c0_7 = arith.constant 0 : index
    %c0_8 = arith.constant 0 : index
    %6 = vector.load %arg4[%c0_7, %c0_8] : memref<32x1xf32, #tpu.memory_space<vmem>>, vector<32x1xf32>
    %7 = vector.broadcast %6 : vector<32x1xf32> to vector<32x8xf32>
    %8 = arith.addf %5, %7 : vector<32x8xf32>
    %c0_9 = arith.constant 0 : index
    %c0_10 = arith.constant 0 : index
    %9 = vector.load %arg5[%c0_9, %c0_10] : memref<64x32xf32, #tpu.memory_space<vmem>>, vector<64x32xf32>
    %cst_11 = arith.constant dense<0.000000e+00> : vector<64x16xf32>
    %10 = tpu.matmul %9, %3, %cst_11 {dimension_numbers = #tpu.dot_dimension_numbers<[1], [0], [0], [1], [0, 0, 1, 1], [], []>} : vector<64x32xf32>, vector<32x16xf32>, vector<64x16xf32> -> vector<64x16xf32>
    %c0_12 = arith.constant 0 : index
    %c0_13 = arith.constant 0 : index
    %11 = vector.load %arg6[%c0_12, %c0_13] : memref<64x1xf32, #tpu.memory_space<vmem>>, vector<64x1xf32>
    %12 = vector.broadcast %11 : vector<64x1xf32> to vector<64x16xf32>
    %13 = arith.addf %10, %12 : vector<64x16xf32>
    %14 = vector.shape_cast %8 : vector<32x8xf32> to vector<4x8x8xf32>
    %15 = tpu.transpose %14, [0, 2, 1] : vector<4x8x8xf32> -> vector<4x8x8xf32>
    %16 = vector.extract_strided_slice %13 {offsets = [0, 0], sizes = [32, 16], strides = [1, 1]} : vector<64x16xf32> to vector<32x16xf32>
    %17 = vector.shape_cast %16 : vector<32x16xf32> to vector<4x8x16xf32>
    %18 = tpu.transpose %17, [0, 2, 1] : vector<4x8x16xf32> -> vector<4x16x8xf32>
    %19 = vector.extract_strided_slice %13 {offsets = [32, 0], sizes = [32, 16], strides = [1, 1]} : vector<64x16xf32> to vector<32x16xf32>
    %20 = vector.shape_cast %19 : vector<32x16xf32> to vector<4x8x16xf32>
    %21 = tpu.transpose %20, [0, 2, 1] : vector<4x8x16xf32> -> vector<4x16x8xf32>
    "tpu.trace_start"() <{level = 10 : i32, message = "hnd,hmd->hnm"}> : () -> ()
    %cst_14 = arith.constant dense<0.000000e+00> : vector<4x8x16xf32>
    %22 = tpu.matmul %15, %18, %cst_14 {dimension_numbers = #tpu.dot_dimension_numbers<[2], [2], [1], [1], [0, 0, 0, 1, 1, 1], [0], [0]>} : vector<4x8x8xf32>, vector<4x16x8xf32>, vector<4x8x16xf32> -> vector<4x8x16xf32>
    "tpu.trace_stop"() : () -> ()
    %cst_15 = arith.constant dense<0xFF800000> : vector<4x8xf32>
    %23 = vector.multi_reduction <maximumf>, %22, %cst_15 [2] : vector<4x8x16xf32> to vector<4x8xf32>
    %24 = vector.shape_cast %23 : vector<4x8xf32> to vector<4x8x1xf32>
    %25 = vector.broadcast %24 : vector<4x8x1xf32> to vector<4x8x16xf32>
    %26 = arith.subf %22, %25 : vector<4x8x16xf32>
    %27 = math.exp %26 : vector<4x8x16xf32>
    %cst_16 = arith.constant dense<0.000000e+00> : vector<4x8xf32>
    %28 = vector.multi_reduction <add>, %27, %cst_16 [2] : vector<4x8x16xf32> to vector<4x8xf32>
    %29 = vector.shape_cast %28 : vector<4x8xf32> to vector<4x8x1xf32>
    "tpu.trace_start"() <{level = 10 : i32, message = "hnm,hmd->hnd"}> : () -> ()
    %cst_17 = arith.constant dense<0.000000e+00> : vector<4x8x8xf32>
    %30 = tpu.matmul %27, %21, %cst_17 {dimension_numbers = #tpu.dot_dimension_numbers<[2], [1], [1], [2], [0, 0, 0, 1, 1, 2], [0], [0]>} : vector<4x8x16xf32>, vector<4x16x8xf32>, vector<4x8x8xf32> -> vector<4x8x8xf32>
    "tpu.trace_stop"() : () -> ()
    %31 = tpu.reciprocal %29 : vector<4x8x1xf32> -> vector<4x8x1xf32>
    %32 = vector.broadcast %31 : vector<4x8x1xf32> to vector<4x8x8xf32>
    %33 = arith.mulf %30, %32 : vector<4x8x8xf32>
    %34 = tpu.transpose %33, [0, 2, 1] : vector<4x8x8xf32> -> vector<4x8x8xf32>
    %35 = vector.shape_cast %34 : vector<4x8x8xf32> to vector<32x8xf32>
    %c0_18 = arith.constant 0 : index
    %c0_19 = arith.constant 0 : index
    %36 = vector.load %arg7[%c0_18, %c0_19] : memref<64x32xf32, #tpu.memory_space<vmem>>, vector<64x32xf32>
    %cst_20 = arith.constant dense<0.000000e+00> : vector<64x8xf32>
    %37 = tpu.matmul %36, %1, %cst_20 {dimension_numbers = #tpu.dot_dimension_numbers<[1], [0], [0], [1], [0, 0, 1, 1], [], []>} : vector<64x32xf32>, vector<32x8xf32>, vector<64x8xf32> -> vector<64x8xf32>
    %c0_21 = arith.constant 0 : index
    %c0_22 = arith.constant 0 : index
    %38 = vector.load %arg8[%c0_21, %c0_22] : memref<64x32xf32, #tpu.memory_space<vmem>>, vector<64x32xf32>
    %cst_23 = arith.constant dense<0.000000e+00> : vector<64x8xf32>
    %39 = tpu.matmul %38, %35, %cst_23 {dimension_numbers = #tpu.dot_dimension_numbers<[1], [0], [0], [1], [0, 0, 1, 1], [], []>} : vector<64x32xf32>, vector<32x8xf32>, vector<64x8xf32> -> vector<64x8xf32>
    %40 = arith.addf %37, %39 : vector<64x8xf32>
    %c0_24 = arith.constant 0 : index
    %c0_25 = arith.constant 0 : index
    %41 = vector.load %arg9[%c0_24, %c0_25] : memref<64x1xf32, #tpu.memory_space<vmem>>, vector<64x1xf32>
    %42 = vector.broadcast %41 : vector<64x1xf32> to vector<64x8xf32>
    %43 = arith.addf %40, %42 : vector<64x8xf32>
    %cst_26 = arith.constant dense<0.000000e+00> : vector<64xf32>
    %44 = vector.multi_reduction <add>, %43, %cst_26 [1] : vector<64x8xf32> to vector<64xf32>
    %45 = vector.shape_cast %44 : vector<64xf32> to vector<64x1xf32>
    %cst_27 = arith.constant 8.000000e+00 : f32
    %46 = vector.broadcast %cst_27 : f32 to vector<64x1xf32>
    %47 = arith.divf %45, %46 : vector<64x1xf32>
    %48 = vector.broadcast %47 : vector<64x1xf32> to vector<64x8xf32>
    %49 = arith.subf %43, %48 : vector<64x8xf32>
    %50 = arith.mulf %49, %49 : vector<64x8xf32>
    %cst_28 = arith.constant dense<0.000000e+00> : vector<64xf32>
    %51 = vector.multi_reduction <add>, %50, %cst_28 [1] : vector<64x8xf32> to vector<64xf32>
    %52 = vector.shape_cast %51 : vector<64xf32> to vector<64x1xf32>
    %cst_29 = arith.constant 8.000000e+00 : f32
    %53 = vector.broadcast %cst_29 : f32 to vector<64x1xf32>
    %54 = arith.divf %52, %53 : vector<64x1xf32>
    %55 = vector.broadcast %47 : vector<64x1xf32> to vector<64x8xf32>
    %56 = arith.subf %43, %55 : vector<64x8xf32>
    %cst_30 = arith.constant 9.99999974E-6 : f32
    %57 = vector.broadcast %cst_30 : f32 to vector<64x1xf32>
    %58 = arith.addf %54, %57 : vector<64x1xf32>
    %59 = math.rsqrt %58 : vector<64x1xf32>
    %60 = vector.broadcast %59 : vector<64x1xf32> to vector<64x8xf32>
    %61 = arith.mulf %56, %60 : vector<64x8xf32>
    %cst_31 = arith.constant 0.000000e+00 : f32
    %62 = vector.broadcast %cst_31 : f32 to vector<64x8xf32>
    %63 = arith.maximumf %61, %62 : vector<64x8xf32>
    %c0_32 = arith.constant 0 : index
    %c0_33 = arith.constant 0 : index
    %64 = vector.load %arg10[%c0_32, %c0_33] : memref<32x64xf32, #tpu.memory_space<vmem>>, vector<32x64xf32>
    %cst_34 = arith.constant dense<0.000000e+00> : vector<32x8xf32>
    %65 = tpu.matmul %64, %63, %cst_34 {dimension_numbers = #tpu.dot_dimension_numbers<[1], [0], [0], [1], [0, 0, 1, 1], [], []>} : vector<32x64xf32>, vector<64x8xf32>, vector<32x8xf32> -> vector<32x8xf32>
    %c0_35 = arith.constant 0 : index
    %c0_36 = arith.constant 0 : index
    %66 = vector.load %arg11[%c0_35, %c0_36] : memref<32x1xf32, #tpu.memory_space<vmem>>, vector<32x1xf32>
    %67 = vector.broadcast %66 : vector<32x1xf32> to vector<32x8xf32>
    %68 = arith.addf %65, %67 : vector<32x8xf32>
    %c0_37 = arith.constant 0 : index
    %c0_38 = arith.constant 0 : index
    %c0_39 = arith.constant 0 : index
    %69 = vector.load %arg12[%c0_37, %c0_38, %c0_39] : memref<1x32x8xf32, #tpu.memory_space<vmem>>, vector<1x32x8xf32>
    %70 = vector.shape_cast %69 : vector<1x32x8xf32> to vector<32x8xf32>
    %71 = vector.shape_cast %68 : vector<32x8xf32> to vector<1x32x8xf32>
    tpu.vector_store %arg12[%c0_37, %c0_38, %c0_39], %71 {strides = array<i32>} : memref<1x32x8xf32, #tpu.memory_space<vmem>>, vector<1x32x8xf32>,
    return
  }
  func.func @transform_0(%arg0: i32) -> (i32, i32, i32) {
    %c0_i32 = arith.constant 0 : i32
    %c0_i32_0 = arith.constant 0 : i32
    %c0_i32_1 = arith.constant 0 : i32
    return %arg0, %c0_i32, %c0_i32_0 : i32, i32, i32
  }
  func.func @transform_1(%arg0: i32) -> (i32, i32, i32) {
    %c0_i32 = arith.constant 0 : i32
    %c0_i32_0 = arith.constant 0 : i32
    %c0_i32_1 = arith.constant 0 : i32
    return %arg0, %c0_i32, %c0_i32_0 : i32, i32, i32
  }
  func.func @transform_2(%arg0: i32) -> (i32, i32) {
    %c0_i32 = arith.constant 0 : i32
    %c0_i32_0 = arith.constant 0 : i32
    %c0_i32_1 = arith.constant 0 : i32
    return %c0_i32, %c0_i32_0 : i32, i32
  }
  func.func @transform_3(%arg0: i32) -> (i32, i32) {
    %c0_i32 = arith.constant 0 : i32
    %c0_i32_0 = arith.constant 0 : i32
    %c0_i32_1 = arith.constant 0 : i32
    return %c0_i32, %c0_i32_0 : i32, i32
  }
  func.func @transform_4(%arg0: i32) -> (i32, i32) {
    %c0_i32 = arith.constant 0 : i32
    %c0_i32_0 = arith.constant 0 : i32
    %c0_i32_1 = arith.constant 0 : i32
    return %c0_i32, %c0_i32_0 : i32, i32
  }
  func.func @transform_5(%arg0: i32) -> (i32, i32) {
    %c0_i32 = arith.constant 0 : i32
    %c0_i32_0 = arith.constant 0 : i32
    %c0_i32_1 = arith.constant 0 : i32
    return %c0_i32, %c0_i32_0 : i32, i32
  }
  func.func @transform_6(%arg0: i32) -> (i32, i32) {
    %c0_i32 = arith.constant 0 : i32
    %c0_i32_0 = arith.constant 0 : i32
    %c0_i32_1 = arith.constant 0 : i32
    return %c0_i32, %c0_i32_0 : i32, i32
  }
  func.func @transform_7(%arg0: i32) -> (i32, i32) {
    %c0_i32 = arith.constant 0 : i32
    %c0_i32_0 = arith.constant 0 : i32
    %c0_i32_1 = arith.constant 0 : i32
    return %c0_i32, %c0_i32_0 : i32, i32
  }
  func.func @transform_8(%arg0: i32) -> (i32, i32) {
    %c0_i32 = arith.constant 0 : i32
    %c0_i32_0 = arith.constant 0 : i32
    %c0_i32_1 = arith.constant 0 : i32
    return %c0_i32, %c0_i32_0 : i32, i32
  }
  func.func @transform_9(%arg0: i32) -> (i32, i32) {
    %c0_i32 = arith.constant 0 : i32
    %c0_i32_0 = arith.constant 0 : i32
    %c0_i32_1 = arith.constant 0 : i32
    return %c0_i32, %c0_i32_0 : i32, i32
  }
  func.func @transform_10(%arg0: i32) -> (i32, i32) {
    %c0_i32 = arith.constant 0 : i32
    %c0_i32_0 = arith.constant 0 : i32
    %c0_i32_1 = arith.constant 0 : i32
    return %c0_i32, %c0_i32_0 : i32, i32
  }
  func.func @transform_11(%arg0: i32) -> (i32, i32, i32) {
    %c0_i32 = arith.constant 0 : i32
    %c0_i32_0 = arith.constant 0 : i32
    %c0_i32_1 = arith.constant 0 : i32
    return %arg0, %c0_i32, %c0_i32_0 : i32, i32, i32
  }
}

</mosaic_0001>

<llo_original>
// kernel: tpu_custom_call.1
$region0: #{tpu_custom_call.1}
  #allocation0 [shape = 'u32[]', space=smem, size = 0x4, offset = 0x4, fixed_abs, tag = 'smem constant byte address 0x4 - core index']
  #allocation1 [shape = 'u32[144,128]{1,0:T(1,128)}', space=vmem, size = 0x12000, scoped, tag = 'internal scratch']
  %s0 = inlined_call_operand.vmem [shape: f32[2,32,8], index: 0, kind: input, shape index: {}]
  %s1 = inlined_call_operand.vmem [shape: f32[2,32,16], index: 1, kind: input, shape index: {}]
  %s2 = inlined_call_operand.vmem [shape: f32[32,32], index: 2, kind: input, shape index: {}]
  %s3 = inlined_call_operand.vmem [shape: f32[32,1], index: 3, kind: input, shape index: {}]
  %s4 = inlined_call_operand.vmem [shape: f32[64,32], index: 4, kind: input, shape index: {}]
  %s5 = inlined_call_operand.vmem [shape: f32[64,1], index: 5, kind: input, shape index: {}]
  %s6 = inlined_call_operand.vmem [shape: f32[64,32], index: 6, kind: input, shape index: {}]
  %s7 = inlined_call_operand.vmem [shape: f32[64,32], index: 7, kind: input, shape index: {}]
  %s8 = inlined_call_operand.vmem [shape: f32[64,1], index: 8, kind: input, shape index: {}]
  %s9 = inlined_call_operand.vmem [shape: f32[32,64], index: 9, kind: input, shape index: {}]
  %s10 = inlined_call_operand.vmem [shape: f32[32,1], index: 10, kind: input, shape index: {}]
  %s11 = inlined_call_operand.vmem [shape: f32[2,32,8], index: 11, kind: output, shape index: {}]
  %s12 = sld [smem:[#allocation0]]
  $region77: #{tpu_custom_call.1} parent=0
    _
  %s14 = ssub.s32 1, %s12
  %s15 = scalar_select 0, %s14, %s12
  loop: start=0, step=1, limit=4
  $region2: #{tpu_custom_call.1} parent=0 // loop_pre_header
    _
  $region3: #{tpu_custom_call.1} parent=0 // loop_header
    %s17 = sphi 0, %s21
    %p18 = scmp.ge.s32.totalorder %s17, 4
    %s27 = sphi 0, %s29
    %s30 = sphi 0, %s27
    %s31 = sphi 0, %s30
    %s47 = sphi 0, %s31
    %s53 = sphi 0, %s55
    %s56 = sphi 0, %s53
    %s57 = sphi 0, %s56
    %s73 = sphi 0, %s57
    %s77 = sphi 0, %s77
    %s79 = sphi 0, %s77
    %s80 = sphi 0, %s79
    %s94 = sphi 0, %s80
    %s98 = sphi 0, %s98
    %s100 = sphi 0, %s98
    %s101 = sphi 0, %s100
    %s115 = sphi 0, %s101
    %s119 = sphi 0, %s119
    %s121 = sphi 0, %s119
    %s122 = sphi 0, %s121
    %s136 = sphi 0, %s122
    %s140 = sphi 0, %s140
    %s142 = sphi 0, %s140
    %s143 = sphi 0, %s142
    %s157 = sphi 0, %s143
    %s161 = sphi 0, %s161
    %s163 = sphi 0, %s161
    %s164 = sphi 0, %s163
    %s178 = sphi 0, %s164
    %s182 = sphi 0, %s182
    %s184 = sphi 0, %s182
    %s185 = sphi 0, %s184
    %s199 = sphi 0, %s185
    %s203 = sphi 0, %s203
    %s205 = sphi 0, %s203
    %s206 = sphi 0, %s205
    %s220 = sphi 0, %s206
    %s224 = sphi 0, %s224
    %s226 = sphi 0, %s224
    %s227 = sphi 0, %s226
    %s241 = sphi 0, %s227
    %s245 = sphi 0, %s245
    %s247 = sphi 0, %s245
    %s248 = sphi 0, %s247
    %s262 = sphi 0, %s248
    %s268 = sphi 0, %s270
    %s271 = sphi 0, %s268
    %s272 = sphi 0, %s271
    %s288 = sphi 0, %s272
  $region4: #{tpu_custom_call.1} parent=0 // loop_header_branch
    %20 = sbr.rel (%p18) target = $region8
  $region5: #{tpu_custom_call.1} parent=0 // loop_body
    %s22 = ssub.s32 %s17, 1
    %s23 = ssub.s32 %s17, 2
    %s24 = sadd.s32 %s17, 1
    %s25 = ssub.s32 %s17, %s24
    %p26 = scmp.eq.s32.totalorder %s25, 0
    %s28 = sadd.s32 %s27, 1
    %s29 = scalar_select %p26, %s27, %s28
    %p32 = pneg %p26
    %p33 = scmp.eq.s32.totalorder %s17, 1
    %p34 = por %p32, %p33
    %p35 = scmp.ne.s32.totalorder %s27, %s30
    %p36 = scmp.eq.s32.totalorder %s17, 0
    %p37 = por %p35, %p36
    %p38 = scmp.ne.s32.totalorder %s27, %s30
    %p39 = scmp.eq.s32.totalorder %s22, 1
    %p40 = por %p38, %p39
    %p41 = scmp.ne.s32.totalorder %s30, %s31
    %p42 = scmp.eq.s32.totalorder %s22, 0
    %p43 = por %p41, %p42
    %p44 = scmp.ne.s32.totalorder %s30, %s31
    %p45 = scmp.eq.s32.totalorder %s23, 1
    %p46 = por %p44, %p45
    %p48 = scmp.ne.s32.totalorder %s31, %s47
    %p49 = scmp.eq.s32.totalorder %s23, 0
    %p50 = por %p48, %p49
    %s51 = ssub.s32 %s17, %s24
    %p52 = scmp.eq.s32.totalorder %s51, 0
    %s54 = sadd.s32 %s53, 1
    %s55 = scalar_select %p52, %s53, %s54
    %p58 = pneg %p52
    %p59 = scmp.eq.s32.totalorder %s17, 1
    %p60 = por %p58, %p59
    %p61 = scmp.ne.s32.totalorder %s53, %s56
    %p62 = scmp.eq.s32.totalorder %s17, 0
    %p63 = por %p61, %p62
    %p64 = scmp.ne.s32.totalorder %s53, %s56
    %p65 = scmp.eq.s32.totalorder %s22, 1
    %p66 = por %p64, %p65
    %p67 = scmp.ne.s32.totalorder %s56, %s57
    %p68 = scmp.eq.s32.totalorder %s22, 0
    %p69 = por %p67, %p68
    %p70 = scmp.ne.s32.totalorder %s56, %s57
    %p71 = scmp.eq.s32.totalorder %s23, 1
    %p72 = por %p70, %p71
    %p74 = scmp.ne.s32.totalorder %s57, %s73
    %p75 = scmp.eq.s32.totalorder %s23, 0
    %p76 = por %p74, %p75
    %s78 = sadd.s32 %s77, 1
    %p81 = scmp.eq.s32.totalorder %s17, 1
    %p82 = scmp.ne.s32.totalorder %s77, %s79
    %p83 = scmp.eq.s32.totalorder %s17, 0
    %p84 = por %p82, %p83
    %p85 = scmp.ne.s32.totalorder %s77, %s79
    %p86 = scmp.eq.s32.totalorder %s22, 1
    %p87 = por %p85, %p86
    %p88 = scmp.ne.s32.totalorder %s79, %s80
    %p89 = scmp.eq.s32.totalorder %s22, 0
    %p90 = por %p88, %p89
    %p91 = scmp.ne.s32.totalorder %s79, %s80
    %p92 = scmp.eq.s32.totalorder %s23, 1
    %p93 = por %p91, %p92
    %p95 = scmp.ne.s32.totalorder %s80, %s94
    %p96 = scmp.eq.s32.totalorder %s23, 0
    %p97 = por %p95, %p96
    %s99 = sadd.s32 %s98, 1
    %p102 = scmp.eq.s32.totalorder %s17, 1
    %p103 = scmp.ne.s32.totalorder %s98, %s100
    %p104 = scmp.eq.s32.totalorder %s17, 0
    %p105 = por %p103, %p104
    %p106 = scmp.ne.s32.totalorder %s98, %s100
    %p107 = scmp.eq.s32.totalorder %s22, 1
    %p108 = por %p106, %p107
    %p109 = scmp.ne.s32.totalorder %s100, %s101
    %p110 = scmp.eq.s32.totalorder %s22, 0
    %p111 = por %p109, %p110
    %p112 = scmp.ne.s32.totalorder %s100, %s101
    %p113 = scmp.eq.s32.totalorder %s23, 1
    %p114 = por %p112, %p113
    %p116 = scmp.ne.s32.totalorder %s101, %s115
    %p117 = scmp.eq.s32.totalorder %s23, 0
    %p118 = por %p116, %p117
    %s120 = sadd.s32 %s119, 1
    %p123 = scmp.eq.s32.totalorder %s17, 1
    %p124 = scmp.ne.s32.totalorder %s119, %s121
    %p125 = scmp.eq.s32.totalorder %s17, 0
    %p126 = por %p124, %p125
    %p127 = scmp.ne.s32.totalorder %s119, %s121
    %p128 = scmp.eq.s32.totalorder %s22, 1
    %p129 = por %p127, %p128
    %p130 = scmp.ne.s32.totalorder %s121, %s122
    %p131 = scmp.eq.s32.totalorder %s22, 0
    %p132 = por %p130, %p131
    %p133 = scmp.ne.s32.totalorder %s121, %s122
    %p134 = scmp.eq.s32.totalorder %s23, 1
    %p135 = por %p133, %p134
    %p137 = scmp.ne.s32.totalorder %s122, %s136
    %p138 = scmp.eq.s32.totalorder %s23, 0
    %p139 = por %p137, %p138
    %s141 = sadd.s32 %s140, 1
    %p144 = scmp.eq.s32.totalorder %s17, 1
    %p145 = scmp.ne.s32.totalorder %s140, %s142
    %p146 = scmp.eq.s32.totalorder %s17, 0
    %p147 = por %p145, %p146
    %p148 = scmp.ne.s32.totalorder %s140, %s142
    %p149 = scmp.eq.s32.totalorder %s22, 1
    %p150 = por %p148, %p149
    %p151 = scmp.ne.s32.totalorder %s142, %s143
    %p152 = scmp.eq.s32.totalorder %s22, 0
    %p153 = por %p151, %p152
    %p154 = scmp.ne.s32.totalorder %s142, %s143
    %p155 = scmp.eq.s32.totalorder %s23, 1
    %p156 = por %p154, %p155
    %p158 = scmp.ne.s32.totalorder %s143, %s157
    %p159 = scmp.eq.s32.totalorder %s23, 0
    %p160 = por %p158, %p159
    %s162 = sadd.s32 %s161, 1
    %p165 = scmp.eq.s32.totalorder %s17, 1
    %p166 = scmp.ne.s32.totalorder %s161, %s163
    %p167 = scmp.eq.s32.totalorder %s17, 0
    %p168 = por %p166, %p167
    %p169 = scmp.ne.s32.totalorder %s161, %s163
    %p170 = scmp.eq.s32.totalorder %s22, 1
    %p171 = por %p169, %p170
    %p172 = scmp.ne.s32.totalorder %s163, %s164
    %p173 = scmp.eq.s32.totalorder %s22, 0
    %p174 = por %p172, %p173
    %p175 = scmp.ne.s32.totalorder %s163, %s164
    %p176 = scmp.eq.s32.totalorder %s23, 1
    %p177 = por %p175, %p176
    %p179 = scmp.ne.s32.totalorder %s164, %s178
    %p180 = scmp.eq.s32.totalorder %s23, 0
    %p181 = por %p179, %p180
    %s183 = sadd.s32 %s182, 1
    %p186 = scmp.eq.s32.totalorder %s17, 1
    %p187 = scmp.ne.s32.totalorder %s182, %s184
    %p188 = scmp.eq.s32.totalorder %s17, 0
    %p189 = por %p187, %p188
    %p190 = scmp.ne.s32.totalorder %s182, %s184
    %p191 = scmp.eq.s32.totalorder %s22, 1
    %p192 = por %p190, %p191
    %p193 = scmp.ne.s32.totalorder %s184, %s185
    %p194 = scmp.eq.s32.totalorder %s22, 0
    %p195 = por %p193, %p194
    %p196 = scmp.ne.s32.totalorder %s184, %s185
    %p197 = scmp.eq.s32.totalorder %s23, 1
    %p198 = por %p196, %p197
    %p200 = scmp.ne.s32.totalorder %s185, %s199
    %p201 = scmp.eq.s32.totalorder %s23, 0
    %p202 = por %p200, %p201
    %s204 = sadd.s32 %s203, 1
    %p207 = scmp.eq.s32.totalorder %s17, 1
    %p208 = scmp.ne.s32.totalorder %s203, %s205
    %p209 = scmp.eq.s32.totalorder %s17, 0
    %p210 = por %p208, %p209
    %p211 = scmp.ne.s32.totalorder %s203, %s205
    %p212 = scmp.eq.s32.totalorder %s22, 1
    %p213 = por %p211, %p212
    %p214 = scmp.ne.s32.totalorder %s205, %s206
    %p215 = scmp.eq.s32.totalorder %s22, 0
    %p216 = por %p214, %p215
    %p217 = scmp.ne.s32.totalorder %s205, %s206
    %p218 = scmp.eq.s32.totalorder %s23, 1
    %p219 = por %p217, %p218
    %p221 = scmp.ne.s32.totalorder %s206, %s220
    %p222 = scmp.eq.s32.totalorder %s23, 0
    %p223 = por %p221, %p222
    %s225 = sadd.s32 %s224, 1
    %p228 = scmp.eq.s32.totalorder %s17, 1
    %p229 = scmp.ne.s32.totalorder %s224, %s226
    %p230 = scmp.eq.s32.totalorder %s17, 0
    %p231 = por %p229, %p230
    %p232 = scmp.ne.s32.totalorder %s224, %s226
    %p233 = scmp.eq.s32.totalorder %s22, 1
    %p234 = por %p232, %p233
    %p235 = scmp.ne.s32.totalorder %s226, %s227
    %p236 = scmp.eq.s32.totalorder %s22, 0
    %p237 = por %p235, %p236
    %p238 = scmp.ne.s32.totalorder %s226, %s227
    %p239 = scmp.eq.s32.totalorder %s23, 1
    %p240 = por %p238, %p239
    %p242 = scmp.ne.s32.totalorder %s227, %s241
    %p243 = scmp.eq.s32.totalorder %s23, 0
    %p244 = por %p242, %p243
    %s246 = sadd.s32 %s245, 1
    %p249 = scmp.eq.s32.totalorder %s17, 1
    %p250 = scmp.ne.s32.totalorder %s245, %s247
    %p251 = scmp.eq.s32.totalorder %s17, 0
    %p252 = por %p250, %p251
    %p253 = scmp.ne.s32.totalorder %s245, %s247
    %p254 = scmp.eq.s32.totalorder %s22, 1
    %p255 = por %p253, %p254
    %p256 = scmp.ne.s32.totalorder %s247, %s248
    %p257 = scmp.eq.s32.totalorder %s22, 0
    %p258 = por %p256, %p257
    %p259 = scmp.ne.s32.totalorder %s247, %s248
    %p260 = scmp.eq.s32.totalorder %s23, 1
    %p261 = por %p259, %p260
    %p263 = scmp.ne.s32.totalorder %s248, %s262
    %p264 = scmp.eq.s32.totalorder %s23, 0
    %p265 = por %p263, %p264
    %s266 = ssub.s32 %s17, %s24
    %p267 = scmp.eq.s32.totalorder %s266, 0
    %s269 = sadd.s32 %s268, 1
    %s270 = scalar_select %p267, %s268, %s269
    %p273 = pneg %p267
    %p274 = scmp.eq.s32.totalorder %s17, 1
    %p275 = por %p273, %p274
    %p276 = scmp.ne.s32.totalorder %s268, %s271
    %p277 = scmp.eq.s32.totalorder %s17, 0
    %p278 = por %p276, %p277
    %p279 = scmp.ne.s32.totalorder %s268, %s271
    %p280 = scmp.eq.s32.totalorder %s22, 1
    %p281 = por %p279, %p280
    %p282 = scmp.ne.s32.totalorder %s271, %s272
    %p283 = scmp.eq.s32.totalorder %s22, 0
    %p284 = por %p282, %p283
    %p285 = scmp.ne.s32.totalorder %s271, %s272
    %p286 = scmp.eq.s32.totalorder %s23, 1
    %p287 = por %p285, %p286
    %p289 = scmp.ne.s32.totalorder %s272, %s288
    %p290 = scmp.eq.s32.totalorder %s23, 0
    %p291 = por %p289, %p290
    %p292 = scmp.le.s32.totalorder 1, %s17
    %p293 = scmp.lt.s32.totalorder %s17, 3
    %p294 = pnand %p292, %p293
    %p295 = pneg %p294
    // Predicated region
    $region9: #{tpu_custom_call.1} parent=5 // pred_check
      _
    $region10: #{tpu_custom_call.1} parent=5 // pred_check_branch
      %297 = sbr.rel (%p294) target = $region12
    $region11: #{tpu_custom_call.1} parent=5 // pred_region
      %s298 = ssub.s32 %s17, 1
      // Predicated region
      $region13: #{tpu_custom_call.1} parent=11 // pred_check
        %p299 = pneg %p90
      $region14: #{tpu_custom_call.1} parent=11 // pred_check_branch
        %301 = sbr.rel (%p299) target = $region16
      $region15: #{tpu_custom_call.1} parent=11 // pred_region
        _
      $region16: #{tpu_custom_call.1} parent=11 // pred_fallthru
        _
      // Predicated region
      $region17: #{tpu_custom_call.1} parent=11 // pred_check
        %p302 = pneg %p111
      $region18: #{tpu_custom_call.1} parent=11 // pred_check_branch
        %304 = sbr.rel (%p302) target = $region20
      $region19: #{tpu_custom_call.1} parent=11 // pred_region
        _
      $region20: #{tpu_custom_call.1} parent=11 // pred_fallthru
        _
      // Predicated region
      $region21: #{tpu_custom_call.1} parent=11 // pred_check
        %p305 = pneg %p132
      $region22: #{tpu_custom_call.1} parent=11 // pred_check_branch
        %307 = sbr.rel (%p305) target = $region24
      $region23: #{tpu_custom_call.1} parent=11 // pred_region
        _
      $region24: #{tpu_custom_call.1} parent=11 // pred_fallthru
        _
      // Predicated region
      $region25: #{tpu_custom_call.1} parent=11 // pred_check
        %p308 = pneg %p153
      $region26: #{tpu_custom_call.1} parent=11 // pred_check_branch
        %310 = sbr.rel (%p308) target = $region28
      $region27: #{tpu_custom_call.1} parent=11 // pred_region
        _
      $region28: #{tpu_custom_call.1} parent=11 // pred_fallthru
        _
      // Predicated region
      $region29: #{tpu_custom_call.1} parent=11 // pred_check
        %p311 = pneg %p174
      $region30: #{tpu_custom_call.1} parent=11 // pred_check_branch
        %313 = sbr.rel (%p311) target = $region32
      $region31: #{tpu_custom_call.1} parent=11 // pred_region
        _
      $region32: #{tpu_custom_call.1} parent=11 // pred_fallthru
        _
      // Predicated region
      $region33: #{tpu_custom_call.1} parent=11 // pred_check
        %p314 = pneg %p195
      $region34: #{tpu_custom_call.1} parent=11 // pred_check_branch
        %316 = sbr.rel (%p314) target = $region36
      $region35: #{tpu_custom_call.1} parent=11 // pred_region
        _
      $region36: #{tpu_custom_call.1} parent=11 // pred_fallthru
        _
      // Predicated region
      $region37: #{tpu_custom_call.1} parent=11 // pred_check
        %p317 = pneg %p216
      $region38: #{tpu_custom_call.1} parent=11 // pred_check_branch
        %319 = sbr.rel (%p317) target = $region40
      $region39: #{tpu_custom_call.1} parent=11 // pred_region
        _
      $region40: #{tpu_custom_call.1} parent=11 // pred_fallthru
        _
      // Predicated region
      $region41: #{tpu_custom_call.1} parent=11 // pred_check
        %p320 = pneg %p237
      $region42: #{tpu_custom_call.1} parent=11 // pred_check_branch
        %322 = sbr.rel (%p320) target = $region44
      $region43: #{tpu_custom_call.1} parent=11 // pred_region
        _
      $region44: #{tpu_custom_call.1} parent=11 // pred_fallthru
        _
      // Predicated region
      $region45: #{tpu_custom_call.1} parent=11 // pred_check
        %p323 = pneg %p258
      $region46: #{tpu_custom_call.1} parent=11 // pred_check_branch
        %325 = sbr.rel (%p323) target = $region48
      $region47: #{tpu_custom_call.1} parent=11 // pred_region
        _
      $region48: #{tpu_custom_call.1} parent=11 // pred_fallthru
        _
    $region12: #{tpu_custom_call.1} parent=5 // pred_fallthru
      _
    %p326 = scmp.lt.s32.totalorder %s17, 2
    // Predicated region
    $region49: #{tpu_custom_call.1} parent=5 // pred_check
      %p327 = pneg %p326
    $region50: #{tpu_custom_call.1} parent=5 // pred_check_branch
      %329 = sbr.rel (%p327) target = $region52
    $region51: #{tpu_custom_call.1} parent=5 // pred_region
      // Predicated region
      $region53: #{tpu_custom_call.1} parent=51 // pred_check
        %p330 = pneg %p37
      $region54: #{tpu_custom_call.1} parent=51 // pred_check_branch
        %332 = sbr.rel (%p330) target = $region56
      $region55: #{tpu_custom_call.1} parent=51 // pred_region
        %p333 = scmp.lt.s32.totalorder %s17, 1
        %s334 = scalar_select %p333, %s17, 1
        %s335 = smul.addr %s334, 4
        %s336 = smul.addr %s335, 8
        %s337 = scalar_lea.vmem %s0, %s336
      $region56: #{tpu_custom_call.1} parent=51 // pred_fallthru
        _
      // Predicated region
      $region57: #{tpu_custom_call.1} parent=51 // pred_check
        %p338 = pneg %p63
      $region58: #{tpu_custom_call.1} parent=51 // pred_check_branch
        %340 = sbr.rel (%p338) target = $region60
      $region59: #{tpu_custom_call.1} parent=51 // pred_region
        %p341 = scmp.lt.s32.totalorder %s17, 1
        %s342 = scalar_select %p341, %s17, 1
        %s343 = smul.addr %s342, 4
        %s344 = smul.addr %s343, 8
        %s345 = scalar_lea.vmem %s1, %s344
      $region60: #{tpu_custom_call.1} parent=51 // pred_fallthru
        _
    $region52: #{tpu_custom_call.1} parent=5 // pred_fallthru
      _
    %p346 = scmp.le.s32.totalorder 1, %s17
    %p347 = scmp.lt.s32.totalorder %s17, 3
    %p348 = pnand %p346, %p347
    %p349 = pneg %p348
    // Predicated region
    $region61: #{tpu_custom_call.1} parent=5 // pred_check
      _
    $region62: #{tpu_custom_call.1} parent=5 // pred_check_branch
      %351 = sbr.rel (%p348) target = $region64
    $region63: #{tpu_custom_call.1} parent=5 // pred_region
      %s352 = ssub.s32 %s17, 1
      %p353 = scmp.lt.s32.totalorder %s22, 1
      %s354 = scalar_select %p353, %s22, 1
      %s355 = smul.addr %s354, 4
      %s356 = smul.addr %s355, 8
      %s357 = scalar_lea.vmem %s0, %s356
      %p358 = pneg %p43
      %p359 = pneg %p40
      %p360 = scmp.lt.s32.totalorder %s22, 1
      %s361 = scalar_select %p360, %s22, 1
      %s362 = smul.addr %s361, 4
      %s363 = smul.addr %s362, 8
      %s364 = scalar_lea.vmem %s1, %s363
      %p365 = pneg %p69
      %p366 = pneg %p66
      %p367 = pneg %p90
      %p368 = pneg %p87
      %p369 = pneg %p111
      %p370 = pneg %p108
      %p371 = pneg %p132
      %p372 = pneg %p129
      %p373 = pneg %p153
      %p374 = pneg %p150
      %p375 = pneg %p174
      %p376 = pneg %p171
      %p377 = pneg %p195
      %p378 = pneg %p192
      %p379 = pneg %p216
      %p380 = pneg %p213
      %p381 = pneg %p237
      %p382 = pneg %p234
      %p383 = pneg %p258
      %p384 = pneg %p255
      %p385 = pneg %p284
      %p386 = pneg %p281
      %p387 = scmp.lt.s32.totalorder %s22, 1
      %s388 = scalar_select %p387, %s22, 1
      %s389 = smul.addr %s388, 4
      %s390 = smul.addr %s389, 8
      %s391 = scalar_lea.vmem %s11, %s390
      %p392 = scmp.lt.s32.totalorder %s22, 1
      %s393 = scalar_select %p392, %s22, 1
      %s394 = smul.addr %s393, 4
      %s395 = smul.addr %s394, 8
      %s396 = scalar_lea.vmem %s0, %s395
      %p397 = scmp.lt.s32.totalorder %s22, 1
      %s398 = scalar_select %p397, %s22, 1
      %s399 = smul.addr %s398, 4
      %s400 = smul.addr %s399, 8
      %s401 = scalar_lea.vmem %s1, %s400
      %p402 = scmp.lt.s32.totalorder %s22, 1
      %s403 = scalar_select %p402, %s22, 1
      %s404 = smul.addr %s403, 4
      %s405 = smul.addr %s404, 8
      %s406 = scalar_lea.vmem %s11, %s405
      %v407 = vld [vmem:[%s396] sm:$0xff]
      %v408 = vld [vmem:[%s396 + $0x8] sm:$0xff]
      %v409 = vld [vmem:[%s396 + $0x10] sm:$0xff]
      %v410 = vld [vmem:[%s396 + $0x18] sm:$0xff]
      %v411 = vld [vmem:[%s401] sm:$0xff]
      %v412 = vld [vmem:[%s401 + $0x8] sm:$0xff]
      %v413 = vld [vmem:[%s401 + $0x10] sm:$0xff]
      %v414 = vld [vmem:[%s401 + $0x18] sm:$0xff]
      %v415 = vld [vmem:[%s2] sm:$0xff]
      %v416 = vld [vmem:[%s2 + $0x8] sm:$0xff]
      %v417 = vld [vmem:[%s2 + $0x10] sm:$0xff]
      %v418 = vld [vmem:[%s2 + $0x18] sm:$0xff]
      %v419 = vld [vmem:[%s3] sm:$0xff]
      %v420 = vld [vmem:[%s3 + $0x8] sm:$0xff]
      %v421 = vld [vmem:[%s3 + $0x10] sm:$0xff]
      %v422 = vld [vmem:[%s3 + $0x18] sm:$0xff]
      %424 = vset.pattern.permute.xlu0 0
      %425 = vperm.xlu0 %424, %v419
      %v426 = vpop.permute.xlu0 %425
      %429 = vset.pattern.permute.xlu0 0
      %430 = vperm.xlu0 %429, %v420
      %v431 = vpop.permute.xlu0 %430
      %434 = vset.pattern.permute.xlu0 0
      %435 = vperm.xlu0 %434, %v421
      %v436 = vpop.permute.xlu0 %435
      %439 = vset.pattern.permute.xlu0 0
      %440 = vperm.xlu0 %439, %v422
      %v441 = vpop.permute.xlu0 %440
      %vm443 = vcmask 261120
      %v445 = vsel %vm443, %v415, 0
      %v448 = vsel %vm443, %v416, 0
      %v451 = vsel %vm443, %v417, 0
      %v454 = vsel %vm443, %v418, 0
      %456 = vmatprep.subr.mxu0 0.0
      %457 = vmatpush1.msra.mxu0 %v407
      %458 = vmatprep.subr.mxu0 0.0
      %459 = vmatpush1.msra.mxu0 %v408
      %460 = vmatprep.subr.mxu0 0.0
      %461 = vmatpush1.msra.mxu0 %v409
      %462 = vmatprep.subr.mxu0 0.0
      %463 = vmatpush1.msra.mxu0 %v410
      %464 = vmatprep.subr.mxu0 0.0
      %465 = vmatpush1.msra.mxu0 0.0
      %466 = vmatprep.subr.mxu0 0.0
      %467 = vmatpush1.msra.mxu0 0.0
      %468 = vmatprep.subr.mxu0 0.0
      %469 = vmatpush1.msra.mxu0 0.0
      %470 = vmatprep.subr.mxu0 0.0
      %471 = vmatpush1.msra.mxu0 0.0
      %472 = vmatprep.subr.mxu0 0.0
      %473 = vmatpush1.msra.mxu0 0.0
      %474 = vmatprep.subr.mxu0 0.0
      %475 = vmatpush1.msra.mxu0 0.0
      %476 = vmatprep.subr.mxu0 0.0
      %477 = vmatpush1.msra.mxu0 0.0
      %478 = vmatprep.subr.mxu0 0.0
      %479 = vmatpush1.msra.mxu0 0.0
      %480 = vmatprep.subr.mxu0 0.0
      %481 = vmatpush1.msra.mxu0 0.0
      %482 = vmatprep.subr.mxu0 0.0
      %483 = vmatpush1.msra.mxu0 0.0
      %484 = vmatprep.subr.mxu0 0.0
      %485 = vmatpush1.msra.mxu0 0.0
      %486 = vmatprep.subr.mxu0 0.0
      %487 = vmatpush1.msra.mxu0 0.0
      %488 = vmatprep.subr.mxu0 0.0
      %489 = vmatpush1.msra.mxu0 0.0
      %490 = vmatprep.subr.mxu0 0.0
      %491 = vmatpush1.msra.mxu0 0.0
      %492 = vmatprep.subr.mxu0 0.0
      %493 = vmatpush1.msra.mxu0 0.0
      %494 = vmatprep.subr.mxu0 0.0
      %495 = vmatpush1.msra.mxu0 0.0
      %496 = vmatprep.subr.mxu0 0.0
      %497 = vmatpush1.msra.mxu0 0.0
      %498 = vmatprep.subr.mxu0 0.0
      %499 = vmatpush1.msra.mxu0 0.0
      %500 = vmatprep.subr.mxu0 0.0
      %501 = vmatpush1.msra.mxu0 0.0
      %502 = vmatprep.subr.mxu0 0.0
      %503 = vmatpush1.msra.mxu0 0.0
      %504 = vmatprep.subr.mxu0 0.0
      %505 = vmatpush1.msra.mxu0 0.0
      %506 = vmatprep.subr.mxu0 0.0
      %507 = vmatpush1.msra.mxu0 0.0
      %508 = vmatprep.subr.mxu0 0.0
      %509 = vmatpush1.msra.mxu0 0.0
      %510 = vmatprep.subr.mxu0 0.0
      %511 = vmatpush1.msra.mxu0 0.0
      %512 = vmatprep.subr.mxu0 0.0
      %513 = vmatpush1.msra.mxu0 0.0
      %514 = vmatprep.subr.mxu0 0.0
      %515 = vmatpush1.msra.mxu0 0.0
      %516 = vmatprep.subr.mxu0 0.0
      %517 = vmatpush1.msra.mxu0 0.0
      %518 = vmatprep.subr.mxu0 0.0
      %519 = vmatpush1.msra.mxu0 0.0
      %520 = vmatprep.mubr.f32.mxu0 0.0
      %521 = vmatmul.mubr.f32.gmra.mrb[0].mxu0 %v445
      %v522 = vpop.f32.mrb[0].mxu0
      %v523 = vadd.f32 %v426, %v522
      %v524 = vpop.f32.mrb[0].mxu0
      %525 = vmatprep.mubr.f32.mxu0 0.0
      %526 = vmatmul.mubr.f32.gmra.mrb[0].mxu0 %v448
      %v527 = vpop.f32.mrb[0].mxu0
      %v528 = vadd.f32 %v431, %v527
      %v529 = vpop.f32.mrb[0].mxu0
      %530 = vmatprep.mubr.f32.mxu0 0.0
      %531 = vmatmul.mubr.f32.gmra.mrb[0].mxu0 %v451
      %v532 = vpop.f32.mrb[0].mxu0
      %v533 = vadd.f32 %v436, %v532
      %v534 = vpop.f32.mrb[0].mxu0
      %535 = vmatprep.mubr.f32.mxu0 0.0
      %536 = vmatmul.mubr.f32.gmra.mrb[0].mxu0 %v454
      %v537 = vpop.f32.mrb[0].mxu0
      %v538 = vadd.f32 %v441, %v537
      %v539 = vpop.f32.mrb[0].mxu0
      %540 = vdwg.mxu0
      %v541 = vld [vmem:[%s4] sm:$0xff]
      %v542 = vld [vmem:[%s4 + $0x8] sm:$0xff]
      %v543 = vld [vmem:[%s4 + $0x10] sm:$0xff]
      %v544 = vld [vmem:[%s4 + $0x18] sm:$0xff]
      %v545 = vld [vmem:[%s4 + $0x20] sm:$0xff]
      %v546 = vld [vmem:[%s4 + $0x28] sm:$0xff]
      %v547 = vld [vmem:[%s4 + $0x30] sm:$0xff]
      %v548 = vld [vmem:[%s4 + $0x38] sm:$0xff]
      %v549 = vld [vmem:[%s5] sm:$0xff]
      %v550 = vld [vmem:[%s5 + $0x8] sm:$0xff]
      %v551 = vld [vmem:[%s5 + $0x10] sm:$0xff]
      %v552 = vld [vmem:[%s5 + $0x18] sm:$0xff]
      %v553 = vld [vmem:[%s5 + $0x20] sm:$0xff]
      %v554 = vld [vmem:[%s5 + $0x28] sm:$0xff]
      %v555 = vld [vmem:[%s5 + $0x30] sm:$0xff]
      %v556 = vld [vmem:[%s5 + $0x38] sm:$0xff]
      %558 = vset.pattern.permute.xlu0 0
      %559 = vperm.xlu0 %558, %v549
      %v560 = vpop.permute.xlu0 %559
      %563 = vset.pattern.permute.xlu0 0
      %564 = vperm.xlu0 %563, %v550
      %v565 = vpop.permute.xlu0 %564
      %568 = vset.pattern.permute.xlu0 0
      %569 = vperm.xlu0 %568, %v551
      %v570 = vpop.permute.xlu0 %569
      %573 = vset.pattern.permute.xlu0 0
      %574 = vperm.xlu0 %573, %v552
      %v575 = vpop.permute.xlu0 %574
      %578 = vset.pattern.permute.xlu0 0
      %579 = vperm.xlu0 %578, %v553
      %v580 = vpop.permute.xlu0 %579
      %583 = vset.pattern.permute.xlu0 0
      %584 = vperm.xlu0 %583, %v554
      %v585 = vpop.permute.xlu0 %584
      %588 = vset.pattern.permute.xlu0 0
      %589 = vperm.xlu0 %588, %v555
      %v590 = vpop.permute.xlu0 %589
      %593 = vset.pattern.permute.xlu0 0
      %594 = vperm.xlu0 %593, %v556
      %v595 = vpop.permute.xlu0 %594
      %v598 = vsel %vm443, %v541, 0
      %v601 = vsel %vm443, %v542, 0
      %v604 = vsel %vm443, %v543, 0
      %v607 = vsel %vm443, %v544, 0
      %v610 = vsel %vm443, %v545, 0
      %v613 = vsel %vm443, %v546, 0
      %v616 = vsel %vm443, %v547, 0
      %v619 = vsel %vm443, %v548, 0
      %621 = vmatprep.subr.mxu0 0.0
      %622 = vmatpush1.msra.mxu0 %v411
      %623 = vmatprep.subr.mxu0 0.0
      %624 = vmatpush1.msra.mxu0 %v412
      %625 = vmatprep.subr.mxu0 0.0
      %626 = vmatpush1.msra.mxu0 %v413
      %627 = vmatprep.subr.mxu0 0.0
      %628 = vmatpush1.msra.mxu0 %v414
      %629 = vmatprep.subr.mxu0 0.0
      %630 = vmatpush1.msra.mxu0 0.0
      %631 = vmatprep.subr.mxu0 0.0
      %632 = vmatpush1.msra.mxu0 0.0
      %633 = vmatprep.subr.mxu0 0.0
      %634 = vmatpush1.msra.mxu0 0.0
      %635 = vmatprep.subr.mxu0 0.0
      %636 = vmatpush1.msra.mxu0 0.0
      %637 = vmatprep.subr.mxu0 0.0
      %638 = vmatpush1.msra.mxu0 0.0
      %639 = vmatprep.subr.mxu0 0.0
      %640 = vmatpush1.msra.mxu0 0.0
      %641 = vmatprep.subr.mxu0 0.0
      %642 = vmatpush1.msra.mxu0 0.0
      %643 = vmatprep.subr.mxu0 0.0
      %644 = vmatpush1.msra.mxu0 0.0
      %645 = vmatprep.subr.mxu0 0.0
      %646 = vmatpush1.msra.mxu0 0.0
      %647 = vmatprep.subr.mxu0 0.0
      %648 = vmatpush1.msra.mxu0 0.0
      %649 = vmatprep.subr.mxu0 0.0
      %650 = vmatpush1.msra.mxu0 0.0
      %651 = vmatprep.subr.mxu0 0.0
      %652 = vmatpush1.msra.mxu0 0.0
      %653 = vmatprep.subr.mxu0 0.0
      %654 = vmatpush1.msra.mxu0 0.0
      %655 = vmatprep.subr.mxu0 0.0
      %656 = vmatpush1.msra.mxu0 0.0
      %657 = vmatprep.subr.mxu0 0.0
      %658 = vmatpush1.msra.mxu0 0.0
      %659 = vmatprep.subr.mxu0 0.0
      %660 = vmatpush1.msra.mxu0 0.0
      %661 = vmatprep.subr.mxu0 0.0
      %662 = vmatpush1.msra.mxu0 0.0
      %663 = vmatprep.subr.mxu0 0.0
      %664 = vmatpush1.msra.mxu0 0.0
      %665 = vmatprep.subr.mxu0 0.0
      %666 = vmatpush1.msra.mxu0 0.0
      %667 = vmatprep.subr.mxu0 0.0
      %668 = vmatpush1.msra.mxu0 0.0
      %669 = vmatprep.subr.mxu0 0.0
      %670 = vmatpush1.msra.mxu0 0.0
      %671 = vmatprep.subr.mxu0 0.0
      %672 = vmatpush1.msra.mxu0 0.0
      %673 = vmatprep.subr.mxu0 0.0
      %674 = vmatpush1.msra.mxu0 0.0
      %675 = vmatprep.subr.mxu0 0.0
      %676 = vmatpush1.msra.mxu0 0.0
      %677 = vmatprep.subr.mxu0 0.0
      %678 = vmatpush1.msra.mxu0 0.0
      %679 = vmatprep.subr.mxu0 0.0
      %680 = vmatpush1.msra.mxu0 0.0
      %681 = vmatprep.subr.mxu0 0.0
      %682 = vmatpush1.msra.mxu0 0.0
      %683 = vmatprep.subr.mxu0 0.0
      %684 = vmatpush1.msra.mxu0 0.0
      %685 = vmatprep.mubr.f32.mxu0 0.0
      %686 = vmatmul.mubr.f32.gmra.mrb[0].mxu0 %v598
      %v687 = vpop.f32.mrb[0].mxu0
      %v688 = vadd.f32 %v560, %v687
      %v689 = vpop.f32.mrb[0].mxu0
      %690 = vmatprep.mubr.f32.mxu0 0.0
      %691 = vmatmul.mubr.f32.gmra.mrb[0].mxu0 %v601
      %v692 = vpop.f32.mrb[0].mxu0
      %v693 = vadd.f32 %v565, %v692
      %v694 = vpop.f32.mrb[0].mxu0
      %695 = vmatprep.mubr.f32.mxu0 0.0
      %696 = vmatmul.mubr.f32.gmra.mrb[0].mxu0 %v604
      %v697 = vpop.f32.mrb[0].mxu0
      %v698 = vadd.f32 %v570, %v697
      %v699 = vpop.f32.mrb[0].mxu0
      %700 = vmatprep.mubr.f32.mxu0 0.0
      %701 = vmatmul.mubr.f32.gmra.mrb[0].mxu0 %v607
      %v702 = vpop.f32.mrb[0].mxu0
      %v703 = vadd.f32 %v575, %v702
      %v704 = vpop.f32.mrb[0].mxu0
      %705 = vmatprep.mubr.f32.mxu0 0.0
      %706 = vmatmul.mubr.f32.gmra.mrb[0].mxu0 %v610
      %v707 = vpop.f32.mrb[0].mxu0
      %v708 = vadd.f32 %v580, %v707
      %v709 = vpop.f32.mrb[0].mxu0
      %710 = vmatprep.mubr.f32.mxu0 0.0
      %711 = vmatmul.mubr.f32.gmra.mrb[0].mxu0 %v613
      %v712 = vpop.f32.mrb[0].mxu0
      %v713 = vadd.f32 %v585, %v712
      %v714 = vpop.f32.mrb[0].mxu0
      %715 = vmatprep.mubr.f32.mxu0 0.0
      %716 = vmatmul.mubr.f32.gmra.mrb[0].mxu0 %v616
      %v717 = vpop.f32.mrb[0].mxu0
      %v718 = vadd.f32 %v590, %v717
      %v719 = vpop.f32.mrb[0].mxu0
      %720 = vmatprep.mubr.f32.mxu0 0.0
      %721 = vmatmul.mubr.f32.gmra.mrb[0].mxu0 %v619
      %v722 = vpop.f32.mrb[0].mxu0
      %v723 = vadd.f32 %v595, %v722
      %v724 = vpop.f32.mrb[0].mxu0
      %725 = vdwg.mxu0
      %726 = vxpose.xlu0.b32.start [1/16] %v523, 128
      %727 = vxpose.xlu0.b32.cont [2/16] 0.0, 128
      %728 = vxpose.xlu0.b32.cont [3/16] 0.0, 128
      %729 = vxpose.xlu0.b32.cont [4/16] 0.0, 128
      %730 = vxpose.xlu0.b32.cont [5/16] 0.0, 128
      %731 = vxpose.xlu0.b32.cont [6/16] 0.0, 128
      %732 = vxpose.xlu0.b32.cont [7/16] 0.0, 128
      %733 = vxpose.xlu0.b32.cont [8/16] 0.0, 128
      %734 = vxpose.xlu0.b32.cont [9/16] 0.0, 128
      %735 = vxpose.xlu0.b32.cont [10/16] 0.0, 128
      %736 = vxpose.xlu0.b32.cont [11/16] 0.0, 128
      %737 = vxpose.xlu0.b32.cont [12/16] 0.0, 128
      %738 = vxpose.xlu0.b32.cont [13/16] 0.0, 128
      %739 = vxpose.xlu0.b32.cont [14/16] 0.0, 128
      %740 = vxpose.xlu0.b32.cont [15/16] 0.0, 128
      %741 = vxpose.xlu0.b32.end [16/16] 0.0, 128
      %v742 = vpop.trf.xlu0
      %v743 = vpop.trf.xlu0
      %v744 = vpop.trf.xlu0
      %v745 = vpop.trf.xlu0
      %v746 = vpop.trf.xlu0
      %v747 = vpop.trf.xlu0
      %v748 = vpop.trf.xlu0
      %v749 = vpop.trf.xlu0
      %v750 = vpop.trf.xlu0
      %v751 = vpop.trf.xlu0
      %v752 = vpop.trf.xlu0
      %v753 = vpop.trf.xlu0
      %v754 = vpop.trf.xlu0
      %v755 = vpop.trf.xlu0
      %v756 = vpop.trf.xlu0
      %v757 = vpop.trf.xlu0
      %758 = vxpose.xlu0.b32.start [1/16] %v528, 128
      %759 = vxpose.xlu0.b32.cont [2/16] 0.0, 128
      %760 = vxpose.xlu0.b32.cont [3/16] 0.0, 128
      %761 = vxpose.xlu0.b32.cont [4/16] 0.0, 128
      %762 = vxpose.xlu0.b32.cont [5/16] 0.0, 128
      %763 = vxpose.xlu0.b32.cont [6/16] 0.0, 128
      %764 = vxpose.xlu0.b32.cont [7/16] 0.0, 128
      %765 = vxpose.xlu0.b32.cont [8/16] 0.0, 128
      %766 = vxpose.xlu0.b32.cont [9/16] 0.0, 128
      %767 = vxpose.xlu0.b32.cont [10/16] 0.0, 128
      %768 = vxpose.xlu0.b32.cont [11/16] 0.0, 128
      %769 = vxpose.xlu0.b32.cont [12/16] 0.0, 128
      %770 = vxpose.xlu0.b32.cont [13/16] 0.0, 128
      %771 = vxpose.xlu0.b32.cont [14/16] 0.0, 128
      %772 = vxpose.xlu0.b32.cont [15/16] 0.0, 128
      %773 = vxpose.xlu0.b32.end [16/16] 0.0, 128
      %v774 = vpop.trf.xlu0
      %v775 = vpop.trf.xlu0
      %v776 = vpop.trf.xlu0
      %v777 = vpop.trf.xlu0
      %v778 = vpop.trf.xlu0
      %v779 = vpop.trf.xlu0
      %v780 = vpop.trf.xlu0
      %v781 = vpop.trf.xlu0
      %v782 = vpop.trf.xlu0
      %v783 = vpop.trf.xlu0
      %v784 = vpop.trf.xlu0
      %v785 = vpop.trf.xlu0
      %v786 = vpop.trf.xlu0
      %v787 = vpop.trf.xlu0
      %v788 = vpop.trf.xlu0
      %v789 = vpop.trf.xlu0
      %790 = vxpose.xlu0.b32.start [1/16] %v533, 128
      %791 = vxpose.xlu0.b32.cont [2/16] 0.0, 128
      %792 = vxpose.xlu0.b32.cont [3/16] 0.0, 128
      %793 = vxpose.xlu0.b32.cont [4/16] 0.0, 128
      %794 = vxpose.xlu0.b32.cont [5/16] 0.0, 128
      %795 = vxpose.xlu0.b32.cont [6/16] 0.0, 128
      %796 = vxpose.xlu0.b32.cont [7/16] 0.0, 128
      %797 = vxpose.xlu0.b32.cont [8/16] 0.0, 128
      %798 = vxpose.xlu0.b32.cont [9/16] 0.0, 128
      %799 = vxpose.xlu0.b32.cont [10/16] 0.0, 128
      %800 = vxpose.xlu0.b32.cont [11/16] 0.0, 128
      %801 = vxpose.xlu0.b32.cont [12/16] 0.0, 128
      %802 = vxpose.xlu0.b32.cont [13/16] 0.0, 128
      %803 = vxpose.xlu0.b32.cont [14/16] 0.0, 128
      %804 = vxpose.xlu0.b32.cont [15/16] 0.0, 128
      %805 = vxpose.xlu0.b32.end [16/16] 0.0, 128
      %v806 = vpop.trf.xlu0
      %v807 = vpop.trf.xlu0
      %v808 = vpop.trf.xlu0
      %v809 = vpop.trf.xlu0
      %v810 = vpop.trf.xlu0
      %v811 = vpop.trf.xlu0
      %v812 = vpop.trf.xlu0
      %v813 = vpop.trf.xlu0
      %v814 = vpop.trf.xlu0
      %v815 = vpop.trf.xlu0
      %v816 = vpop.trf.xlu0
      %v817 = vpop.trf.xlu0
      %v818 = vpop.trf.xlu0
      %v819 = vpop.trf.xlu0
      %v820 = vpop.trf.xlu0
      %v821 = vpop.trf.xlu0
      %822 = vxpose.xlu0.b32.start [1/16] %v538, 128
      %823 = vxpose.xlu0.b32.cont [2/16] 0.0, 128
      %824 = vxpose.xlu0.b32.cont [3/16] 0.0, 128
      %825 = vxpose.xlu0.b32.cont [4/16] 0.0, 128
      %826 = vxpose.xlu0.b32.cont [5/16] 0.0, 128
      %827 = vxpose.xlu0.b32.cont [6/16] 0.0, 128
      %828 = vxpose.xlu0.b32.cont [7/16] 0.0, 128
      %829 = vxpose.xlu0.b32.cont [8/16] 0.0, 128
      %830 = vxpose.xlu0.b32.cont [9/16] 0.0, 128
      %831 = vxpose.xlu0.b32.cont [10/16] 0.0, 128
      %832 = vxpose.xlu0.b32.cont [11/16] 0.0, 128
      %833 = vxpose.xlu0.b32.cont [12/16] 0.0, 128
      %834 = vxpose.xlu0.b32.cont [13/16] 0.0, 128
      %835 = vxpose.xlu0.b32.cont [14/16] 0.0, 128
      %836 = vxpose.xlu0.b32.cont [15/16] 0.0, 128
      %837 = vxpose.xlu0.b32.end [16/16] 0.0, 128
      %v838 = vpop.trf.xlu0
      %v839 = vpop.trf.xlu0
      %v840 = vpop.trf.xlu0
      %v841 = vpop.trf.xlu0
      %v842 = vpop.trf.xlu0
      %v843 = vpop.trf.xlu0
      %v844 = vpop.trf.xlu0
      %v845 = vpop.trf.xlu0
      %v846 = vpop.trf.xlu0
      %v847 = vpop.trf.xlu0
      %v848 = vpop.trf.xlu0
      %v849 = vpop.trf.xlu0
      %v850 = vpop.trf.xlu0
      %v851 = vpop.trf.xlu0
      %v852 = vpop.trf.xlu0
      %v853 = vpop.trf.xlu0
      %vm854 = vcmask 64512
      %v856 = vsel %vm854, %v742, 0
      %858 = vmatprep.subr.mxu0 0.0
      %859 = vmatpush1.msra.mxu0 %v688
      %860 = vmatprep.subr.mxu0 0.0
      %861 = vmatpush1.msra.mxu0 0.0
      %862 = vmatprep.subr.mxu0 0.0
      %863 = vmatpush1.msra.mxu0 0.0
      %864 = vmatprep.subr.mxu0 0.0
      %865 = vmatpush1.msra.mxu0 0.0
      %866 = vmatprep.subr.mxu0 0.0
      %867 = vmatpush1.msra.mxu0 0.0
      %868 = vmatprep.subr.mxu0 0.0
      %869 = vmatpush1.msra.mxu0 0.0
      %870 = vmatprep.subr.mxu0 0.0
      %871 = vmatpush1.msra.mxu0 0.0
      %872 = vmatprep.subr.mxu0 0.0
      %873 = vmatpush1.msra.mxu0 0.0
      %874 = vmatprep.subr.mxu0 0.0
      %875 = vmatpush1.msra.mxu0 0.0
      %876 = vmatprep.subr.mxu0 0.0
      %877 = vmatpush1.msra.mxu0 0.0
      %878 = vmatprep.subr.mxu0 0.0
      %879 = vmatpush1.msra.mxu0 0.0
      %880 = vmatprep.subr.mxu0 0.0
      %881 = vmatpush1.msra.mxu0 0.0
      %882 = vmatprep.subr.mxu0 0.0
      %883 = vmatpush1.msra.mxu0 0.0
      %884 = vmatprep.subr.mxu0 0.0
      %885 = vmatpush1.msra.mxu0 0.0
      %886 = vmatprep.subr.mxu0 0.0
      %887 = vmatpush1.msra.mxu0 0.0
      %888 = vmatprep.subr.mxu0 0.0
      %889 = vmatpush1.msra.mxu0 0.0
      %890 = vmatprep.subr.mxu0 0.0
      %891 = vmatpush1.msra.mxu0 0.0
      %892 = vmatprep.subr.mxu0 0.0
      %893 = vmatpush1.msra.mxu0 0.0
      %894 = vmatprep.subr.mxu0 0.0
      %895 = vmatpush1.msra.mxu0 0.0
      %896 = vmatprep.subr.mxu0 0.0
      %897 = vmatpush1.msra.mxu0 0.0
      %898 = vmatprep.subr.mxu0 0.0
      %899 = vmatpush1.msra.mxu0 0.0
      %900 = vmatprep.subr.mxu0 0.0
      %901 = vmatpush1.msra.mxu0 0.0
      %902 = vmatprep.subr.mxu0 0.0
      %903 = vmatpush1.msra.mxu0 0.0
      %904 = vmatprep.subr.mxu0 0.0
      %905 = vmatpush1.msra.mxu0 0.0
      %906 = vmatprep.subr.mxu0 0.0
      %907 = vmatpush1.msra.mxu0 0.0
      %908 = vmatprep.subr.mxu0 0.0
      %909 = vmatpush1.msra.mxu0 0.0
      %910 = vmatprep.subr.mxu0 0.0
      %911 = vmatpush1.msra.mxu0 0.0
      %912 = vmatprep.subr.mxu0 0.0
      %913 = vmatpush1.msra.mxu0 0.0
      %914 = vmatprep.subr.mxu0 0.0
      %915 = vmatpush1.msra.mxu0 0.0
      %916 = vmatprep.subr.mxu0 0.0
      %917 = vmatpush1.msra.mxu0 0.0
      %918 = vmatprep.subr.mxu0 0.0
      %919 = vmatpush1.msra.mxu0 0.0
      %920 = vmatprep.subr.mxu0 0.0
      %921 = vmatpush1.msra.mxu0 0.0
      %922 = vmatprep.mubr.f32.mxu0 0.0
      %923 = vmatmul.mubr.f32.gmra.mrb[0].mxu0 %v856
      %v924 = vpop.f32.mrb[0].mxu0
      %v925 = vadd.f32 0.0, %v924
      %v926 = vpop.f32.mrb[0].mxu0
      %927 = vdwg.mxu0
      %v929 = vsel %vm854, %v774, 0
      %931 = vmatprep.subr.mxu0 0.0
      %932 = vmatpush1.msra.mxu0 %v693
      %933 = vmatprep.subr.mxu0 0.0
      %934 = vmatpush1.msra.mxu0 0.0
      %935 = vmatprep.subr.mxu0 0.0
      %936 = vmatpush1.msra.mxu0 0.0
      %937 = vmatprep.subr.mxu0 0.0
      %938 = vmatpush1.msra.mxu0 0.0
      %939 = vmatprep.subr.mxu0 0.0
      %940 = vmatpush1.msra.mxu0 0.0
      %941 = vmatprep.subr.mxu0 0.0
      %942 = vmatpush1.msra.mxu0 0.0
      %943 = vmatprep.subr.mxu0 0.0
      %944 = vmatpush1.msra.mxu0 0.0
      %945 = vmatprep.subr.mxu0 0.0
      %946 = vmatpush1.msra.mxu0 0.0
      %947 = vmatprep.subr.mxu0 0.0
      %948 = vmatpush1.msra.mxu0 0.0
      %949 = vmatprep.subr.mxu0 0.0
      %950 = vmatpush1.msra.mxu0 0.0
      %951 = vmatprep.subr.mxu0 0.0
      %952 = vmatpush1.msra.mxu0 0.0
      %953 = vmatprep.subr.mxu0 0.0
      %954 = vmatpush1.msra.mxu0 0.0
      %955 = vmatprep.subr.mxu0 0.0
      %956 = vmatpush1.msra.mxu0 0.0
      %957 = vmatprep.subr.mxu0 0.0
      %958 = vmatpush1.msra.mxu0 0.0
      %959 = vmatprep.subr.mxu0 0.0
      %960 = vmatpush1.msra.mxu0 0.0
      %961 = vmatprep.subr.mxu0 0.0
      %962 = vmatpush1.msra.mxu0 0.0
      %963 = vmatprep.subr.mxu0 0.0
      %964 = vmatpush1.msra.mxu0 0.0
      %965 = vmatprep.subr.mxu0 0.0
      %966 = vmatpush1.msra.mxu0 0.0
      %967 = vmatprep.subr.mxu0 0.0
      %968 = vmatpush1.msra.mxu0 0.0
      %969 = vmatprep.subr.mxu0 0.0
      %970 = vmatpush1.msra.mxu0 0.0
      %971 = vmatprep.subr.mxu0 0.0
      %972 = vmatpush1.msra.mxu0 0.0
      %973 = vmatprep.subr.mxu0 0.0
      %974 = vmatpush1.msra.mxu0 0.0
      %975 = vmatprep.subr.mxu0 0.0
      %976 = vmatpush1.msra.mxu0 0.0
      %977 = vmatprep.subr.mxu0 0.0
      %978 = vmatpush1.msra.mxu0 0.0
      %979 = vmatprep.subr.mxu0 0.0
      %980 = vmatpush1.msra.mxu0 0.0
      %981 = vmatprep.subr.mxu0 0.0
      %982 = vmatpush1.msra.mxu0 0.0
      %983 = vmatprep.subr.mxu0 0.0
      %984 = vmatpush1.msra.mxu0 0.0
      %985 = vmatprep.subr.mxu0 0.0
      %986 = vmatpush1.msra.mxu0 0.0
      %987 = vmatprep.subr.mxu0 0.0
      %988 = vmatpush1.msra.mxu0 0.0
      %989 = vmatprep.subr.mxu0 0.0
      %990 = vmatpush1.msra.mxu0 0.0
      %991 = vmatprep.subr.mxu0 0.0
      %992 = vmatpush1.msra.mxu0 0.0
      %993 = vmatprep.subr.mxu0 0.0
      %994 = vmatpush1.msra.mxu0 0.0
      %995 = vmatprep.mubr.f32.mxu0 0.0
      %996 = vmatmul.mubr.f32.gmra.mrb[0].mxu0 %v929
      %v997 = vpop.f32.mrb[0].mxu0
      %v998 = vadd.f32 0.0, %v997
      %v999 = vpop.f32.mrb[0].mxu0
      %1000 = vdwg.mxu0
      %v1002 = vsel %vm854, %v806, 0
      %1004 = vmatprep.subr.mxu0 0.0
      %1005 = vmatpush1.msra.mxu0 %v698
      %1006 = vmatprep.subr.mxu0 0.0
      %1007 = vmatpush1.msra.mxu0 0.0
      %1008 = vmatprep.subr.mxu0 0.0
      %1009 = vmatpush1.msra.mxu0 0.0
      %1010 = vmatprep.subr.mxu0 0.0
      %1011 = vmatpush1.msra.mxu0 0.0
      %1012 = vmatprep.subr.mxu0 0.0
      %1013 = vmatpush1.msra.mxu0 0.0
      %1014 = vmatprep.subr.mxu0 0.0
      %1015 = vmatpush1.msra.mxu0 0.0
      %1016 = vmatprep.subr.mxu0 0.0
      %1017 = vmatpush1.msra.mxu0 0.0
      %1018 = vmatprep.subr.mxu0 0.0
      %1019 = vmatpush1.msra.mxu0 0.0
      %1020 = vmatprep.subr.mxu0 0.0
      %1021 = vmatpush1.msra.mxu0 0.0
      %1022 = vmatprep.subr.mxu0 0.0
      %1023 = vmatpush1.msra.mxu0 0.0
      %1024 = vmatprep.subr.mxu0 0.0
      %1025 = vmatpush1.msra.mxu0 0.0
      %1026 = vmatprep.subr.mxu0 0.0
      %1027 = vmatpush1.msra.mxu0 0.0
      %1028 = vmatprep.subr.mxu0 0.0
      %1029 = vmatpush1.msra.mxu0 0.0
      %1030 = vmatprep.subr.mxu0 0.0
      %1031 = vmatpush1.msra.mxu0 0.0
      %1032 = vmatprep.subr.mxu0 0.0
      %1033 = vmatpush1.msra.mxu0 0.0
      %1034 = vmatprep.subr.mxu0 0.0
      %1035 = vmatpush1.msra.mxu0 0.0
      %1036 = vmatprep.subr.mxu0 0.0
      %1037 = vmatpush1.msra.mxu0 0.0
      %1038 = vmatprep.subr.mxu0 0.0
      %1039 = vmatpush1.msra.mxu0 0.0
      %1040 = vmatprep.subr.mxu0 0.0
      %1041 = vmatpush1.msra.mxu0 0.0
      %1042 = vmatprep.subr.mxu0 0.0
      %1043 = vmatpush1.msra.mxu0 0.0
      %1044 = vmatprep.subr.mxu0 0.0
      %1045 = vmatpush1.msra.mxu0 0.0
      %1046 = vmatprep.subr.mxu0 0.0
      %1047 = vmatpush1.msra.mxu0 0.0
      %1048 = vmatprep.subr.mxu0 0.0
      %1049 = vmatpush1.msra.mxu0 0.0
      %1050 = vmatprep.subr.mxu0 0.0
      %1051 = vmatpush1.msra.mxu0 0.0
      %1052 = vmatprep.subr.mxu0 0.0
      %1053 = vmatpush1.msra.mxu0 0.0
      %1054 = vmatprep.subr.mxu0 0.0
      %1055 = vmatpush1.msra.mxu0 0.0
      %1056 = vmatprep.subr.mxu0 0.0
      %1057 = vmatpush1.msra.mxu0 0.0
      %1058 = vmatprep.subr.mxu0 0.0
      %1059 = vmatpush1.msra.mxu0 0.0
      %1060 = vmatprep.subr.mxu0 0.0
      %1061 = vmatpush1.msra.mxu0 0.0
      %1062 = vmatprep.subr.mxu0 0.0
      %1063 = vmatpush1.msra.mxu0 0.0
      %1064 = vmatprep.subr.mxu0 0.0
      %1065 = vmatpush1.msra.mxu0 0.0
      %1066 = vmatprep.subr.mxu0 0.0
      %1067 = vmatpush1.msra.mxu0 0.0
      %1068 = vmatprep.mubr.f32.mxu0 0.0
      %1069 = vmatmul.mubr.f32.gmra.mrb[0].mxu0 %v1002
      %v1070 = vpop.f32.mrb[0].mxu0
      %v1071 = vadd.f32 0.0, %v1070
      %v1072 = vpop.f32.mrb[0].mxu0
      %1073 = vdwg.mxu0
      %v1075 = vsel %vm854, %v838, 0
      %1077 = vmatprep.subr.mxu0 0.0
      %1078 = vmatpush1.msra.mxu0 %v703
      %1079 = vmatprep.subr.mxu0 0.0
      %1080 = vmatpush1.msra.mxu0 0.0
      %1081 = vmatprep.subr.mxu0 0.0
      %1082 = vmatpush1.msra.mxu0 0.0
      %1083 = vmatprep.subr.mxu0 0.0
      %1084 = vmatpush1.msra.mxu0 0.0
      %1085 = vmatprep.subr.mxu0 0.0
      %1086 = vmatpush1.msra.mxu0 0.0
      %1087 = vmatprep.subr.mxu0 0.0
      %1088 = vmatpush1.msra.mxu0 0.0
      %1089 = vmatprep.subr.mxu0 0.0
      %1090 = vmatpush1.msra.mxu0 0.0
      %1091 = vmatprep.subr.mxu0 0.0
      %1092 = vmatpush1.msra.mxu0 0.0
      %1093 = vmatprep.subr.mxu0 0.0
      %1094 = vmatpush1.msra.mxu0 0.0
      %1095 = vmatprep.subr.mxu0 0.0
      %1096 = vmatpush1.msra.mxu0 0.0
      %1097 = vmatprep.subr.mxu0 0.0
      %1098 = vmatpush1.msra.mxu0 0.0
      %1099 = vmatprep.subr.mxu0 0.0
      %1100 = vmatpush1.msra.mxu0 0.0
      %1101 = vmatprep.subr.mxu0 0.0
      %1102 = vmatpush1.msra.mxu0 0.0
      %1103 = vmatprep.subr.mxu0 0.0
      %1104 = vmatpush1.msra.mxu0 0.0
      %1105 = vmatprep.subr.mxu0 0.0
      %1106 = vmatpush1.msra.mxu0 0.0
      %1107 = vmatprep.subr.mxu0 0.0
      %1108 = vmatpush1.msra.mxu0 0.0
      %1109 = vmatprep.subr.mxu0 0.0
      %1110 = vmatpush1.msra.mxu0 0.0
      %1111 = vmatprep.subr.mxu0 0.0
      %1112 = vmatpush1.msra.mxu0 0.0
      %1113 = vmatprep.subr.mxu0 0.0
      %1114 = vmatpush1.msra.mxu0 0.0
      %1115 = vmatprep.subr.mxu0 0.0
      %1116 = vmatpush1.msra.mxu0 0.0
      %1117 = vmatprep.subr.mxu0 0.0
      %1118 = vmatpush1.msra.mxu0 0.0
      %1119 = vmatprep.subr.mxu0 0.0
      %1120 = vmatpush1.msra.mxu0 0.0
      %1121 = vmatprep.subr.mxu0 0.0
      %1122 = vmatpush1.msra.mxu0 0.0
      %1123 = vmatprep.subr.mxu0 0.0
      %1124 = vmatpush1.msra.mxu0 0.0
      %1125 = vmatprep.subr.mxu0 0.0
      %1126 = vmatpush1.msra.mxu0 0.0
      %1127 = vmatprep.subr.mxu0 0.0
      %1128 = vmatpush1.msra.mxu0 0.0
      %1129 = vmatprep.subr.mxu0 0.0
      %1130 = vmatpush1.msra.mxu0 0.0
      %1131 = vmatprep.subr.mxu0 0.0
      %1132 = vmatpush1.msra.mxu0 0.0
      %1133 = vmatprep.subr.mxu0 0.0
      %1134 = vmatpush1.msra.mxu0 0.0
      %1135 = vmatprep.subr.mxu0 0.0
      %1136 = vmatpush1.msra.mxu0 0.0
      %1137 = vmatprep.subr.mxu0 0.0
      %1138 = vmatpush1.msra.mxu0 0.0
      %1139 = vmatprep.subr.mxu0 0.0
      %1140 = vmatpush1.msra.mxu0 0.0
      %1141 = vmatprep.mubr.f32.mxu0 0.0
      %1142 = vmatmul.mubr.f32.gmra.mrb[0].mxu0 %v1075
      %v1143 = vpop.f32.mrb[0].mxu0
      %v1144 = vadd.f32 0.0, %v1143
      %v1145 = vpop.f32.mrb[0].mxu0
      %1146 = vdwg.mxu0
      %vm1147 = vcmask 130048
      %v1148 = vsel %vm1147, %v925, -inf
      %1149 = vmax.xlane.f32.xlu0 %v1148
      %v1150 = vpop.xlane.xlu0 %1149
      %v1151 = vsel %vm1147, %v998, -inf
      %1152 = vmax.xlane.f32.xlu0 %v1151
      %v1153 = vpop.xlane.xlu0 %1152
      %v1154 = vsel %vm1147, %v1071, -inf
      %1155 = vmax.xlane.f32.xlu0 %v1154
      %v1156 = vpop.xlane.xlu0 %1155
      %v1157 = vsel %vm1147, %v1144, -inf
      %1158 = vmax.xlane.f32.xlu0 %v1157
      %v1159 = vpop.xlane.xlu0 %1158
      %v1160 = vsub.f32 %v925, %v1150
      %v1161 = vsub.f32 %v998, %v1153
      %v1162 = vsub.f32 %v1071, %v1156
      %v1163 = vsub.f32 %v1144, %v1159
      %v1164 = vmul.f32 %v1160, 1.442695
      %v1165 = vpow.pop %v1164
      %v1166 = vmul.f32 %v1161, 1.442695
      %v1167 = vpow.pop %v1166
      %v1168 = vmul.f32 %v1162, 1.442695
      %v1169 = vpow.pop %v1168
      %v1170 = vmul.f32 %v1163, 1.442695
      %v1171 = vpow.pop %v1170
      %v1172 = vsel %vm1147, %v1165, 0.0
      %1173 = vadd.xlane.f32.xlu0 %v1172
      %v1174 = vpop.xlane.xlu0 %1173
      %v1175 = vsel %vm1147, %v1167, 0.0
      %1176 = vadd.xlane.f32.xlu0 %v1175
      %v1177 = vpop.xlane.xlu0 %1176
      %v1178 = vsel %vm1147, %v1169, 0.0
      %1179 = vadd.xlane.f32.xlu0 %v1178
      %v1180 = vpop.xlane.xlu0 %1179
      %v1181 = vsel %vm1147, %v1171, 0.0
      %1182 = vadd.xlane.f32.xlu0 %v1181
      %v1183 = vpop.xlane.xlu0 %1182
      %v1185 = vsel %vm1147, %v1165, 0
      %v1188 = vsel %vm1147, %v708, 0
      %1190 = vmatprep.subr.mxu0 0.0
      %1191 = vmatpush1.xpose.msra.mxu0 %v1188
      %1192 = vmatprep.subr.mxu0 0.0
      %1193 = vmatpush1.xpose.msra.mxu0 0.0
      %1194 = vmatprep.subr.mxu0 0.0
      %1195 = vmatpush1.xpose.msra.mxu0 0.0
      %1196 = vmatprep.subr.mxu0 0.0
      %1197 = vmatpush1.xpose.msra.mxu0 0.0
      %1198 = vmatprep.subr.mxu0 0.0
      %1199 = vmatpush1.xpose.msra.mxu0 0.0
      %1200 = vmatprep.subr.mxu0 0.0
      %1201 = vmatpush1.xpose.msra.mxu0 0.0
      %1202 = vmatprep.subr.mxu0 0.0
      %1203 = vmatpush1.xpose.msra.mxu0 0.0
      %1204 = vmatprep.subr.mxu0 0.0
      %1205 = vmatpush1.xpose.msra.mxu0 0.0
      %1206 = vmatprep.subr.mxu0 0.0
      %1207 = vmatpush1.xpose.msra.mxu0 0.0
      %1208 = vmatprep.subr.mxu0 0.0
      %1209 = vmatpush1.xpose.msra.mxu0 0.0
      %1210 = vmatprep.subr.mxu0 0.0
      %1211 = vmatpush1.xpose.msra.mxu0 0.0
      %1212 = vmatprep.subr.mxu0 0.0
      %1213 = vmatpush1.xpose.msra.mxu0 0.0
      %1214 = vmatprep.subr.mxu0 0.0
      %1215 = vmatpush1.xpose.msra.mxu0 0.0
      %1216 = vmatprep.subr.mxu0 0.0
      %1217 = vmatpush1.xpose.msra.mxu0 0.0
      %1218 = vmatprep.subr.mxu0 0.0
      %1219 = vmatpush1.xpose.msra.mxu0 0.0
      %1220 = vmatprep.subr.mxu0 0.0
      %1221 = vmatpush1.xpose.msra.mxu0 0.0
      %1222 = vmatprep.subr.mxu0 0.0
      %1223 = vmatpush1.xpose.msra.mxu0 0.0
      %1224 = vmatprep.subr.mxu0 0.0
      %1225 = vmatpush1.xpose.msra.mxu0 0.0
      %1226 = vmatprep.subr.mxu0 0.0
      %1227 = vmatpush1.xpose.msra.mxu0 0.0
      %1228 = vmatprep.subr.mxu0 0.0
      %1229 = vmatpush1.xpose.msra.mxu0 0.0
      %1230 = vmatprep.subr.mxu0 0.0
      %1231 = vmatpush1.xpose.msra.mxu0 0.0
      %1232 = vmatprep.subr.mxu0 0.0
      %1233 = vmatpush1.xpose.msra.mxu0 0.0
      %1234 = vmatprep.subr.mxu0 0.0
      %1235 = vmatpush1.xpose.msra.mxu0 0.0
      %1236 = vmatprep.subr.mxu0 0.0
      %1237 = vmatpush1.xpose.msra.mxu0 0.0
      %1238 = vmatprep.subr.mxu0 0.0
      %1239 = vmatpush1.xpose.msra.mxu0 0.0
      %1240 = vmatprep.subr.mxu0 0.0
      %1241 = vmatpush1.xpose.msra.mxu0 0.0
      %1242 = vmatprep.subr.mxu0 0.0
      %1243 = vmatpush1.xpose.msra.mxu0 0.0
      %1244 = vmatprep.subr.mxu0 0.0
      %1245 = vmatpush1.xpose.msra.mxu0 0.0
      %1246 = vmatprep.subr.mxu0 0.0
      %1247 = vmatpush1.xpose.msra.mxu0 0.0
      %1248 = vmatprep.subr.mxu0 0.0
      %1249 = vmatpush1.xpose.msra.mxu0 0.0
      %1250 = vmatprep.subr.mxu0 0.0
      %1251 = vmatpush1.xpose.msra.mxu0 0.0
      %1252 = vmatprep.subr.mxu0 0.0
      %1253 = vmatpush1.xpose.msra.mxu0 0.0
      %1254 = vmatprep.mubr.f32.mxu0 0.0
      %1255 = vmatmul.mubr.f32.gmra.mrb[0].mxu0 %v1185
      %v1256 = vpop.f32.mrb[0].mxu0
      %v1257 = vadd.f32 0.0, %v1256
      %v1258 = vpop.f32.mrb[0].mxu0
      %1259 = vdwg.mxu0
      %v1261 = vsel %vm1147, %v1167, 0
      %v1264 = vsel %vm1147, %v713, 0
      %1266 = vmatprep.subr.mxu0 0.0
      %1267 = vmatpush1.xpose.msra.mxu0 %v1264
      %1268 = vmatprep.subr.mxu0 0.0
      %1269 = vmatpush1.xpose.msra.mxu0 0.0
      %1270 = vmatprep.subr.mxu0 0.0
      %1271 = vmatpush1.xpose.msra.mxu0 0.0
      %1272 = vmatprep.subr.mxu0 0.0
      %1273 = vmatpush1.xpose.msra.mxu0 0.0
      %1274 = vmatprep.subr.mxu0 0.0
      %1275 = vmatpush1.xpose.msra.mxu0 0.0
      %1276 = vmatprep.subr.mxu0 0.0
      %1277 = vmatpush1.xpose.msra.mxu0 0.0
      %1278 = vmatprep.subr.mxu0 0.0
      %1279 = vmatpush1.xpose.msra.mxu0 0.0
      %1280 = vmatprep.subr.mxu0 0.0
      %1281 = vmatpush1.xpose.msra.mxu0 0.0
      %1282 = vmatprep.subr.mxu0 0.0
      %1283 = vmatpush1.xpose.msra.mxu0 0.0
      %1284 = vmatprep.subr.mxu0 0.0
      %1285 = vmatpush1.xpose.msra.mxu0 0.0
      %1286 = vmatprep.subr.mxu0 0.0
      %1287 = vmatpush1.xpose.msra.mxu0 0.0
      %1288 = vmatprep.subr.mxu0 0.0
      %1289 = vmatpush1.xpose.msra.mxu0 0.0
      %1290 = vmatprep.subr.mxu0 0.0
      %1291 = vmatpush1.xpose.msra.mxu0 0.0
      %1292 = vmatprep.subr.mxu0 0.0
      %1293 = vmatpush1.xpose.msra.mxu0 0.0
      %1294 = vmatprep.subr.mxu0 0.0
      %1295 = vmatpush1.xpose.msra.mxu0 0.0
      %1296 = vmatprep.subr.mxu0 0.0
      %1297 = vmatpush1.xpose.msra.mxu0 0.0
      %1298 = vmatprep.subr.mxu0 0.0
      %1299 = vmatpush1.xpose.msra.mxu0 0.0
      %1300 = vmatprep.subr.mxu0 0.0
      %1301 = vmatpush1.xpose.msra.mxu0 0.0
      %1302 = vmatprep.subr.mxu0 0.0
      %1303 = vmatpush1.xpose.msra.mxu0 0.0
      %1304 = vmatprep.subr.mxu0 0.0
      %1305 = vmatpush1.xpose.msra.mxu0 0.0
      %1306 = vmatprep.subr.mxu0 0.0
      %1307 = vmatpush1.xpose.msra.mxu0 0.0
      %1308 = vmatprep.subr.mxu0 0.0
      %1309 = vmatpush1.xpose.msra.mxu0 0.0
      %1310 = vmatprep.subr.mxu0 0.0
      %1311 = vmatpush1.xpose.msra.mxu0 0.0
      %1312 = vmatprep.subr.mxu0 0.0
      %1313 = vmatpush1.xpose.msra.mxu0 0.0
      %1314 = vmatprep.subr.mxu0 0.0
      %1315 = vmatpush1.xpose.msra.mxu0 0.0
      %1316 = vmatprep.subr.mxu0 0.0
      %1317 = vmatpush1.xpose.msra.mxu0 0.0
      %1318 = vmatprep.subr.mxu0 0.0
      %1319 = vmatpush1.xpose.msra.mxu0 0.0
      %1320 = vmatprep.subr.mxu0 0.0
      %1321 = vmatpush1.xpose.msra.mxu0 0.0
      %1322 = vmatprep.subr.mxu0 0.0
      %1323 = vmatpush1.xpose.msra.mxu0 0.0
      %1324 = vmatprep.subr.mxu0 0.0
      %1325 = vmatpush1.xpose.msra.mxu0 0.0
      %1326 = vmatprep.subr.mxu0 0.0
      %1327 = vmatpush1.xpose.msra.mxu0 0.0
      %1328 = vmatprep.subr.mxu0 0.0
      %1329 = vmatpush1.xpose.msra.mxu0 0.0
      %1330 = vmatprep.mubr.f32.mxu0 0.0
      %1331 = vmatmul.mubr.f32.gmra.mrb[0].mxu0 %v1261
      %v1332 = vpop.f32.mrb[0].mxu0
      %v1333 = vadd.f32 0.0, %v1332
      %v1334 = vpop.f32.mrb[0].mxu0
      %1335 = vdwg.mxu0
      %v1337 = vsel %vm1147, %v1169, 0
      %v1340 = vsel %vm1147, %v718, 0
      %1342 = vmatprep.subr.mxu0 0.0
      %1343 = vmatpush1.xpose.msra.mxu0 %v1340
      %1344 = vmatprep.subr.mxu0 0.0
      %1345 = vmatpush1.xpose.msra.mxu0 0.0
      %1346 = vmatprep.subr.mxu0 0.0
      %1347 = vmatpush1.xpose.msra.mxu0 0.0
      %1348 = vmatprep.subr.mxu0 0.0
      %1349 = vmatpush1.xpose.msra.mxu0 0.0
      %1350 = vmatprep.subr.mxu0 0.0
      %1351 = vmatpush1.xpose.msra.mxu0 0.0
      %1352 = vmatprep.subr.mxu0 0.0
      %1353 = vmatpush1.xpose.msra.mxu0 0.0
      %1354 = vmatprep.subr.mxu0 0.0
      %1355 = vmatpush1.xpose.msra.mxu0 0.0
      %1356 = vmatprep.subr.mxu0 0.0
      %1357 = vmatpush1.xpose.msra.mxu0 0.0
      %1358 = vmatprep.subr.mxu0 0.0
      %1359 = vmatpush1.xpose.msra.mxu0 0.0
      %1360 = vmatprep.subr.mxu0 0.0
      %1361 = vmatpush1.xpose.msra.mxu0 0.0
      %1362 = vmatprep.subr.mxu0 0.0
      %1363 = vmatpush1.xpose.msra.mxu0 0.0
      %1364 = vmatprep.subr.mxu0 0.0
      %1365 = vmatpush1.xpose.msra.mxu0 0.0
      %1366 = vmatprep.subr.mxu0 0.0
      %1367 = vmatpush1.xpose.msra.mxu0 0.0
      %1368 = vmatprep.subr.mxu0 0.0
      %1369 = vmatpush1.xpose.msra.mxu0 0.0
      %1370 = vmatprep.subr.mxu0 0.0
      %1371 = vmatpush1.xpose.msra.mxu0 0.0
      %1372 = vmatprep.subr.mxu0 0.0
      %1373 = vmatpush1.xpose.msra.mxu0 0.0
      %1374 = vmatprep.subr.mxu0 0.0
      %1375 = vmatpush1.xpose.msra.mxu0 0.0
      %1376 = vmatprep.subr.mxu0 0.0
      %1377 = vmatpush1.xpose.msra.mxu0 0.0
      %1378 = vmatprep.subr.mxu0 0.0
      %1379 = vmatpush1.xpose.msra.mxu0 0.0
      %1380 = vmatprep.subr.mxu0 0.0
      %1381 = vmatpush1.xpose.msra.mxu0 0.0
      %1382 = vmatprep.subr.mxu0 0.0
      %1383 = vmatpush1.xpose.msra.mxu0 0.0
      %1384 = vmatprep.subr.mxu0 0.0
      %1385 = vmatpush1.xpose.msra.mxu0 0.0
      %1386 = vmatprep.subr.mxu0 0.0
      %1387 = vmatpush1.xpose.msra.mxu0 0.0
      %1388 = vmatprep.subr.mxu0 0.0
      %1389 = vmatpush1.xpose.msra.mxu0 0.0
      %1390 = vmatprep.subr.mxu0 0.0
      %1391 = vmatpush1.xpose.msra.mxu0 0.0
      %1392 = vmatprep.subr.mxu0 0.0
      %1393 = vmatpush1.xpose.msra.mxu0 0.0
      %1394 = vmatprep.subr.mxu0 0.0
      %1395 = vmatpush1.xpose.msra.mxu0 0.0
      %1396 = vmatprep.subr.mxu0 0.0
      %1397 = vmatpush1.xpose.msra.mxu0 0.0
      %1398 = vmatprep.subr.mxu0 0.0
      %1399 = vmatpush1.xpose.msra.mxu0 0.0
      %1400 = vmatprep.subr.mxu0 0.0
      %1401 = vmatpush1.xpose.msra.mxu0 0.0
      %1402 = vmatprep.subr.mxu0 0.0
      %1403 = vmatpush1.xpose.msra.mxu0 0.0
      %1404 = vmatprep.subr.mxu0 0.0
      %1405 = vmatpush1.xpose.msra.mxu0 0.0
      %1406 = vmatprep.mubr.f32.mxu0 0.0
      %1407 = vmatmul.mubr.f32.gmra.mrb[0].mxu0 %v1337
      %v1408 = vpop.f32.mrb[0].mxu0
      %v1409 = vadd.f32 0.0, %v1408
      %v1410 = vpop.f32.mrb[0].mxu0
      %1411 = vdwg.mxu0
      %v1413 = vsel %vm1147, %v1171, 0
      %v1416 = vsel %vm1147, %v723, 0
      %1418 = vmatprep.subr.mxu0 0.0
      %1419 = vmatpush1.xpose.msra.mxu0 %v1416
      %1420 = vmatprep.subr.mxu0 0.0
      %1421 = vmatpush1.xpose.msra.mxu0 0.0
      %1422 = vmatprep.subr.mxu0 0.0
      %1423 = vmatpush1.xpose.msra.mxu0 0.0
      %1424 = vmatprep.subr.mxu0 0.0
      %1425 = vmatpush1.xpose.msra.mxu0 0.0
      %1426 = vmatprep.subr.mxu0 0.0
      %1427 = vmatpush1.xpose.msra.mxu0 0.0
      %1428 = vmatprep.subr.mxu0 0.0
      %1429 = vmatpush1.xpose.msra.mxu0 0.0
      %1430 = vmatprep.subr.mxu0 0.0
      %1431 = vmatpush1.xpose.msra.mxu0 0.0
      %1432 = vmatprep.subr.mxu0 0.0
      %1433 = vmatpush1.xpose.msra.mxu0 0.0
      %1434 = vmatprep.subr.mxu0 0.0
      %1435 = vmatpush1.xpose.msra.mxu0 0.0
      %1436 = vmatprep.subr.mxu0 0.0
      %1437 = vmatpush1.xpose.msra.mxu0 0.0
      %1438 = vmatprep.subr.mxu0 0.0
      %1439 = vmatpush1.xpose.msra.mxu0 0.0
      %1440 = vmatprep.subr.mxu0 0.0
      %1441 = vmatpush1.xpose.msra.mxu0 0.0
      %1442 = vmatprep.subr.mxu0 0.0
      %1443 = vmatpush1.xpose.msra.mxu0 0.0
      %1444 = vmatprep.subr.mxu0 0.0
      %1445 = vmatpush1.xpose.msra.mxu0 0.0
      %1446 = vmatprep.subr.mxu0 0.0
      %1447 = vmatpush1.xpose.msra.mxu0 0.0
      %1448 = vmatprep.subr.mxu0 0.0
      %1449 = vmatpush1.xpose.msra.mxu0 0.0
      %1450 = vmatprep.subr.mxu0 0.0
      %1451 = vmatpush1.xpose.msra.mxu0 0.0
      %1452 = vmatprep.subr.mxu0 0.0
      %1453 = vmatpush1.xpose.msra.mxu0 0.0
      %1454 = vmatprep.subr.mxu0 0.0
      %1455 = vmatpush1.xpose.msra.mxu0 0.0
      %1456 = vmatprep.subr.mxu0 0.0
      %1457 = vmatpush1.xpose.msra.mxu0 0.0
      %1458 = vmatprep.subr.mxu0 0.0
      %1459 = vmatpush1.xpose.msra.mxu0 0.0
      %1460 = vmatprep.subr.mxu0 0.0
      %1461 = vmatpush1.xpose.msra.mxu0 0.0
      %1462 = vmatprep.subr.mxu0 0.0
      %1463 = vmatpush1.xpose.msra.mxu0 0.0
      %1464 = vmatprep.subr.mxu0 0.0
      %1465 = vmatpush1.xpose.msra.mxu0 0.0
      %1466 = vmatprep.subr.mxu0 0.0
      %1467 = vmatpush1.xpose.msra.mxu0 0.0
      %1468 = vmatprep.subr.mxu0 0.0
      %1469 = vmatpush1.xpose.msra.mxu0 0.0
      %1470 = vmatprep.subr.mxu0 0.0
      %1471 = vmatpush1.xpose.msra.mxu0 0.0
      %1472 = vmatprep.subr.mxu0 0.0
      %1473 = vmatpush1.xpose.msra.mxu0 0.0
      %1474 = vmatprep.subr.mxu0 0.0
      %1475 = vmatpush1.xpose.msra.mxu0 0.0
      %1476 = vmatprep.subr.mxu0 0.0
      %1477 = vmatpush1.xpose.msra.mxu0 0.0
      %1478 = vmatprep.subr.mxu0 0.0
      %1479 = vmatpush1.xpose.msra.mxu0 0.0
      %1480 = vmatprep.subr.mxu0 0.0
      %1481 = vmatpush1.xpose.msra.mxu0 0.0
      %1482 = vmatprep.mubr.f32.mxu0 0.0
      %1483 = vmatmul.mubr.f32.gmra.mrb[0].mxu0 %v1413
      %v1484 = vpop.f32.mrb[0].mxu0
      %v1485 = vadd.f32 0.0, %v1484
      %v1486 = vpop.f32.mrb[0].mxu0
      %1487 = vdwg.mxu0
      %v1488 = vrcp.pop %v1174
      %v1489 = vrcp.pop %v1177
      %v1490 = vrcp.pop %v1180
      %v1491 = vrcp.pop %v1183
      %v1492 = vmul.f32 %v1257, %v1488
      %v1493 = vmul.f32 %v1333, %v1489
      %v1494 = vmul.f32 %v1409, %v1490
      %v1495 = vmul.f32 %v1485, %v1491
      %1496 = vxpose.xlu0.b32.start [1/16] %v1492, 128
      %1497 = vxpose.xlu0.b32.cont [2/16] 0.0, 128
      %1498 = vxpose.xlu0.b32.cont [3/16] 0.0, 128
      %1499 = vxpose.xlu0.b32.cont [4/16] 0.0, 128
      %1500 = vxpose.xlu0.b32.cont [5/16] 0.0, 128
      %1501 = vxpose.xlu0.b32.cont [6/16] 0.0, 128
      %1502 = vxpose.xlu0.b32.cont [7/16] 0.0, 128
      %1503 = vxpose.xlu0.b32.cont [8/16] 0.0, 128
      %1504 = vxpose.xlu0.b32.cont [9/16] 0.0, 128
      %1505 = vxpose.xlu0.b32.cont [10/16] 0.0, 128
      %1506 = vxpose.xlu0.b32.cont [11/16] 0.0, 128
      %1507 = vxpose.xlu0.b32.cont [12/16] 0.0, 128
      %1508 = vxpose.xlu0.b32.cont [13/16] 0.0, 128
      %1509 = vxpose.xlu0.b32.cont [14/16] 0.0, 128
      %1510 = vxpose.xlu0.b32.cont [15/16] 0.0, 128
      %1511 = vxpose.xlu0.b32.end [16/16] 0.0, 128
      %v1512 = vpop.trf.xlu0
      %v1513 = vpop.trf.xlu0
      %v1514 = vpop.trf.xlu0
      %v1515 = vpop.trf.xlu0
      %v1516 = vpop.trf.xlu0
      %v1517 = vpop.trf.xlu0
      %v1518 = vpop.trf.xlu0
      %v1519 = vpop.trf.xlu0
      %v1520 = vpop.trf.xlu0
      %v1521 = vpop.trf.xlu0
      %v1522 = vpop.trf.xlu0
      %v1523 = vpop.trf.xlu0
      %v1524 = vpop.trf.xlu0
      %v1525 = vpop.trf.xlu0
      %v1526 = vpop.trf.xlu0
      %v1527 = vpop.trf.xlu0
      %1528 = vxpose.xlu0.b32.start [1/16] %v1493, 128
      %1529 = vxpose.xlu0.b32.cont [2/16] 0.0, 128
      %1530 = vxpose.xlu0.b32.cont [3/16] 0.0, 128
      %1531 = vxpose.xlu0.b32.cont [4/16] 0.0, 128
      %1532 = vxpose.xlu0.b32.cont [5/16] 0.0, 128
      %1533 = vxpose.xlu0.b32.cont [6/16] 0.0, 128
      %1534 = vxpose.xlu0.b32.cont [7/16] 0.0, 128
      %1535 = vxpose.xlu0.b32.cont [8/16] 0.0, 128
      %1536 = vxpose.xlu0.b32.cont [9/16] 0.0, 128
      %1537 = vxpose.xlu0.b32.cont [10/16] 0.0, 128
      %1538 = vxpose.xlu0.b32.cont [11/16] 0.0, 128
      %1539 = vxpose.xlu0.b32.cont [12/16] 0.0, 128
      %1540 = vxpose.xlu0.b32.cont [13/16] 0.0, 128
      %1541 = vxpose.xlu0.b32.cont [14/16] 0.0, 128
      %1542 = vxpose.xlu0.b32.cont [15/16] 0.0, 128
      %1543 = vxpose.xlu0.b32.end [16/16] 0.0, 128
      %v1544 = vpop.trf.xlu0
      %v1545 = vpop.trf.xlu0
      %v1546 = vpop.trf.xlu0
      %v1547 = vpop.trf.xlu0
      %v1548 = vpop.trf.xlu0
      %v1549 = vpop.trf.xlu0
      %v1550 = vpop.trf.xlu0
      %v1551 = vpop.trf.xlu0
      %v1552 = vpop.trf.xlu0
      %v1553 = vpop.trf.xlu0
      %v1554 = vpop.trf.xlu0
      %v1555 = vpop.trf.xlu0
      %v1556 = vpop.trf.xlu0
      %v1557 = vpop.trf.xlu0
      %v1558 = vpop.trf.xlu0
      %v1559 = vpop.trf.xlu0
      %1560 = vxpose.xlu0.b32.start [1/16] %v1494, 128
      %1561 = vxpose.xlu0.b32.cont [2/16] 0.0, 128
      %1562 = vxpose.xlu0.b32.cont [3/16] 0.0, 128
      %1563 = vxpose.xlu0.b32.cont [4/16] 0.0, 128
      %1564 = vxpose.xlu0.b32.cont [5/16] 0.0, 128
      %1565 = vxpose.xlu0.b32.cont [6/16] 0.0, 128
      %1566 = vxpose.xlu0.b32.cont [7/16] 0.0, 128
      %1567 = vxpose.xlu0.b32.cont [8/16] 0.0, 128
      %1568 = vxpose.xlu0.b32.cont [9/16] 0.0, 128
      %1569 = vxpose.xlu0.b32.cont [10/16] 0.0, 128
      %1570 = vxpose.xlu0.b32.cont [11/16] 0.0, 128
      %1571 = vxpose.xlu0.b32.cont [12/16] 0.0, 128
      %1572 = vxpose.xlu0.b32.cont [13/16] 0.0, 128
      %1573 = vxpose.xlu0.b32.cont [14/16] 0.0, 128
      %1574 = vxpose.xlu0.b32.cont [15/16] 0.0, 128
      %1575 = vxpose.xlu0.b32.end [16/16] 0.0, 128
      %v1576 = vpop.trf.xlu0
      %v1577 = vpop.trf.xlu0
      %v1578 = vpop.trf.xlu0
      %v1579 = vpop.trf.xlu0
      %v1580 = vpop.trf.xlu0
      %v1581 = vpop.trf.xlu0
      %v1582 = vpop.trf.xlu0
      %v1583 = vpop.trf.xlu0
      %v1584 = vpop.trf.xlu0
      %v1585 = vpop.trf.xlu0
      %v1586 = vpop.trf.xlu0
      %v1587 = vpop.trf.xlu0
      %v1588 = vpop.trf.xlu0
      %v1589 = vpop.trf.xlu0
      %v1590 = vpop.trf.xlu0
      %v1591 = vpop.trf.xlu0
      %1592 = vxpose.xlu0.b32.start [1/16] %v1495, 128
      %1593 = vxpose.xlu0.b32.cont [2/16] 0.0, 128
      %1594 = vxpose.xlu0.b32.cont [3/16] 0.0, 128
      %1595 = vxpose.xlu0.b32.cont [4/16] 0.0, 128
      %1596 = vxpose.xlu0.b32.cont [5/16] 0.0, 128
      %1597 = vxpose.xlu0.b32.cont [6/16] 0.0, 128
      %1598 = vxpose.xlu0.b32.cont [7/16] 0.0, 128
      %1599 = vxpose.xlu0.b32.cont [8/16] 0.0, 128
      %1600 = vxpose.xlu0.b32.cont [9/16] 0.0, 128
      %1601 = vxpose.xlu0.b32.cont [10/16] 0.0, 128
      %1602 = vxpose.xlu0.b32.cont [11/16] 0.0, 128
      %1603 = vxpose.xlu0.b32.cont [12/16] 0.0, 128
      %1604 = vxpose.xlu0.b32.cont [13/16] 0.0, 128
      %1605 = vxpose.xlu0.b32.cont [14/16] 0.0, 128
      %1606 = vxpose.xlu0.b32.cont [15/16] 0.0, 128
      %1607 = vxpose.xlu0.b32.end [16/16] 0.0, 128
      %v1608 = vpop.trf.xlu0
      %v1609 = vpop.trf.xlu0
      %v1610 = vpop.trf.xlu0
      %v1611 = vpop.trf.xlu0
      %v1612 = vpop.trf.xlu0
      %v1613 = vpop.trf.xlu0
      %v1614 = vpop.trf.xlu0
      %v1615 = vpop.trf.xlu0
      %v1616 = vpop.trf.xlu0
      %v1617 = vpop.trf.xlu0
      %v1618 = vpop.trf.xlu0
      %v1619 = vpop.trf.xlu0
      %v1620 = vpop.trf.xlu0
      %v1621 = vpop.trf.xlu0
      %v1622 = vpop.trf.xlu0
      %v1623 = vpop.trf.xlu0
      %v1624 = vld [vmem:[%s6] sm:$0xff]
      %v1625 = vld [vmem:[%s6 + $0x8] sm:$0xff]
      %v1626 = vld [vmem:[%s6 + $0x10] sm:$0xff]
      %v1627 = vld [vmem:[%s6 + $0x18] sm:$0xff]
      %v1628 = vld [vmem:[%s6 + $0x20] sm:$0xff]
      %v1629 = vld [vmem:[%s6 + $0x28] sm:$0xff]
      %v1630 = vld [vmem:[%s6 + $0x30] sm:$0xff]
      %v1631 = vld [vmem:[%s6 + $0x38] sm:$0xff]
      %v1632 = vld [vmem:[%s7] sm:$0xff]
      %v1633 = vld [vmem:[%s7 + $0x8] sm:$0xff]
      %v1634 = vld [vmem:[%s7 + $0x10] sm:$0xff]
      %v1635 = vld [vmem:[%s7 + $0x18] sm:$0xff]
      %v1636 = vld [vmem:[%s7 + $0x20] sm:$0xff]
      %v1637 = vld [vmem:[%s7 + $0x28] sm:$0xff]
      %v1638 = vld [vmem:[%s7 + $0x30] sm:$0xff]
      %v1639 = vld [vmem:[%s7 + $0x38] sm:$0xff]
      %v1641 = vsel %vm443, %v1632, 0
      %v1644 = vsel %vm443, %v1633, 0
      %v1647 = vsel %vm443, %v1634, 0
      %v1650 = vsel %vm443, %v1635, 0
      %v1653 = vsel %vm443, %v1636, 0
      %v1656 = vsel %vm443, %v1637, 0
      %v1659 = vsel %vm443, %v1638, 0
      %v1662 = vsel %vm443, %v1639, 0
      %1664 = vmatprep.subr.mxu0 0.0
      %1665 = vmatpush1.msra.mxu0 %v1512
      %1666 = vmatprep.subr.mxu0 0.0
      %1667 = vmatpush1.msra.mxu0 %v1544
      %1668 = vmatprep.subr.mxu0 0.0
      %1669 = vmatpush1.msra.mxu0 %v1576
      %1670 = vmatprep.subr.mxu0 0.0
      %1671 = vmatpush1.msra.mxu0 %v1608
      %1672 = vmatprep.subr.mxu0 0.0
      %1673 = vmatpush1.msra.mxu0 0.0
      %1674 = vmatprep.subr.mxu0 0.0
      %1675 = vmatpush1.msra.mxu0 0.0
      %1676 = vmatprep.subr.mxu0 0.0
      %1677 = vmatpush1.msra.mxu0 0.0
      %1678 = vmatprep.subr.mxu0 0.0
      %1679 = vmatpush1.msra.mxu0 0.0
      %1680 = vmatprep.subr.mxu0 0.0
      %1681 = vmatpush1.msra.mxu0 0.0
      %1682 = vmatprep.subr.mxu0 0.0
      %1683 = vmatpush1.msra.mxu0 0.0
      %1684 = vmatprep.subr.mxu0 0.0
      %1685 = vmatpush1.msra.mxu0 0.0
      %1686 = vmatprep.subr.mxu0 0.0
      %1687 = vmatpush1.msra.mxu0 0.0
      %1688 = vmatprep.subr.mxu0 0.0
      %1689 = vmatpush1.msra.mxu0 0.0
      %1690 = vmatprep.subr.mxu0 0.0
      %1691 = vmatpush1.msra.mxu0 0.0
      %1692 = vmatprep.subr.mxu0 0.0
      %1693 = vmatpush1.msra.mxu0 0.0
      %1694 = vmatprep.subr.mxu0 0.0
      %1695 = vmatpush1.msra.mxu0 0.0
      %1696 = vmatprep.subr.mxu0 0.0
      %1697 = vmatpush1.msra.mxu0 0.0
      %1698 = vmatprep.subr.mxu0 0.0
      %1699 = vmatpush1.msra.mxu0 0.0
      %1700 = vmatprep.subr.mxu0 0.0
      %1701 = vmatpush1.msra.mxu0 0.0
      %1702 = vmatprep.subr.mxu0 0.0
      %1703 = vmatpush1.msra.mxu0 0.0
      %1704 = vmatprep.subr.mxu0 0.0
      %1705 = vmatpush1.msra.mxu0 0.0
      %1706 = vmatprep.subr.mxu0 0.0
      %1707 = vmatpush1.msra.mxu0 0.0
      %1708 = vmatprep.subr.mxu0 0.0
      %1709 = vmatpush1.msra.mxu0 0.0
      %1710 = vmatprep.subr.mxu0 0.0
      %1711 = vmatpush1.msra.mxu0 0.0
      %1712 = vmatprep.subr.mxu0 0.0
      %1713 = vmatpush1.msra.mxu0 0.0
      %1714 = vmatprep.subr.mxu0 0.0
      %1715 = vmatpush1.msra.mxu0 0.0
      %1716 = vmatprep.subr.mxu0 0.0
      %1717 = vmatpush1.msra.mxu0 0.0
      %1718 = vmatprep.subr.mxu0 0.0
      %1719 = vmatpush1.msra.mxu0 0.0
      %1720 = vmatprep.subr.mxu0 0.0
      %1721 = vmatpush1.msra.mxu0 0.0
      %1722 = vmatprep.subr.mxu0 0.0
      %1723 = vmatpush1.msra.mxu0 0.0
      %1724 = vmatprep.subr.mxu0 0.0
      %1725 = vmatpush1.msra.mxu0 0.0
      %1726 = vmatprep.subr.mxu0 0.0
      %1727 = vmatpush1.msra.mxu0 0.0
      %1728 = vmatprep.mubr.f32.mxu0 0.0
      %1729 = vmatmul.mubr.f32.gmra.mrb[0].mxu0 %v1641
      %v1730 = vpop.f32.mrb[0].mxu0
      %v1731 = vadd.f32 0.0, %v1730
      %v1732 = vpop.f32.mrb[0].mxu0
      %1733 = vmatprep.mubr.f32.mxu0 0.0
      %1734 = vmatmul.mubr.f32.gmra.mrb[0].mxu0 %v1644
      %v1735 = vpop.f32.mrb[0].mxu0
      %v1736 = vadd.f32 0.0, %v1735
      %v1737 = vpop.f32.mrb[0].mxu0
      %1738 = vmatprep.mubr.f32.mxu0 0.0
      %1739 = vmatmul.mubr.f32.gmra.mrb[0].mxu0 %v1647
      %v1740 = vpop.f32.mrb[0].mxu0
      %v1741 = vadd.f32 0.0, %v1740
      %v1742 = vpop.f32.mrb[0].mxu0
      %1743 = vmatprep.mubr.f32.mxu0 0.0
      %1744 = vmatmul.mubr.f32.gmra.mrb[0].mxu0 %v1650
      %v1745 = vpop.f32.mrb[0].mxu0
      %v1746 = vadd.f32 0.0, %v1745
      %v1747 = vpop.f32.mrb[0].mxu0
      %1748 = vmatprep.mubr.f32.mxu0 0.0
      %1749 = vmatmul.mubr.f32.gmra.mrb[0].mxu0 %v1653
      %v1750 = vpop.f32.mrb[0].mxu0
      %v1751 = vadd.f32 0.0, %v1750
      %v1752 = vpop.f32.mrb[0].mxu0
      %1753 = vmatprep.mubr.f32.mxu0 0.0
      %1754 = vmatmul.mubr.f32.gmra.mrb[0].mxu0 %v1656
      %v1755 = vpop.f32.mrb[0].mxu0
      %v1756 = vadd.f32 0.0, %v1755
      %v1757 = vpop.f32.mrb[0].mxu0
      %1758 = vmatprep.mubr.f32.mxu0 0.0
      %1759 = vmatmul.mubr.f32.gmra.mrb[0].mxu0 %v1659
      %v1760 = vpop.f32.mrb[0].mxu0
      %v1761 = vadd.f32 0.0, %v1760
      %v1762 = vpop.f32.mrb[0].mxu0
      %1763 = vmatprep.mubr.f32.mxu0 0.0
      %1764 = vmatmul.mubr.f32.gmra.mrb[0].mxu0 %v1662
      %v1765 = vpop.f32.mrb[0].mxu0
      %v1766 = vadd.f32 0.0, %v1765
      %v1767 = vpop.f32.mrb[0].mxu0
      %1768 = vdwg.mxu0
      %v1770 = vsel %vm443, %v1624, 0
      %v1773 = vsel %vm443, %v1625, 0
      %v1776 = vsel %vm443, %v1626, 0
      %v1779 = vsel %vm443, %v1627, 0
      %v1782 = vsel %vm443, %v1628, 0
      %v1785 = vsel %vm443, %v1629, 0
      %v1788 = vsel %vm443, %v1630, 0
      %v1791 = vsel %vm443, %v1631, 0
      %1793 = vmatprep.subr.mxu0 0.0
      %1794 = vmatpush1.msra.mxu0 %v407
      %1795 = vmatprep.subr.mxu0 0.0
      %1796 = vmatpush1.msra.mxu0 %v408
      %1797 = vmatprep.subr.mxu0 0.0
      %1798 = vmatpush1.msra.mxu0 %v409
      %1799 = vmatprep.subr.mxu0 0.0
      %1800 = vmatpush1.msra.mxu0 %v410
      %1801 = vmatprep.subr.mxu0 0.0
      %1802 = vmatpush1.msra.mxu0 0.0
      %1803 = vmatprep.subr.mxu0 0.0
      %1804 = vmatpush1.msra.mxu0 0.0
      %1805 = vmatprep.subr.mxu0 0.0
      %1806 = vmatpush1.msra.mxu0 0.0
      %1807 = vmatprep.subr.mxu0 0.0
      %1808 = vmatpush1.msra.mxu0 0.0
      %1809 = vmatprep.subr.mxu0 0.0
      %1810 = vmatpush1.msra.mxu0 0.0
      %1811 = vmatprep.subr.mxu0 0.0
      %1812 = vmatpush1.msra.mxu0 0.0
      %1813 = vmatprep.subr.mxu0 0.0
      %1814 = vmatpush1.msra.mxu0 0.0
      %1815 = vmatprep.subr.mxu0 0.0
      %1816 = vmatpush1.msra.mxu0 0.0
      %1817 = vmatprep.subr.mxu0 0.0
      %1818 = vmatpush1.msra.mxu0 0.0
      %1819 = vmatprep.subr.mxu0 0.0
      %1820 = vmatpush1.msra.mxu0 0.0
      %1821 = vmatprep.subr.mxu0 0.0
      %1822 = vmatpush1.msra.mxu0 0.0
      %1823 = vmatprep.subr.mxu0 0.0
      %1824 = vmatpush1.msra.mxu0 0.0
      %1825 = vmatprep.subr.mxu0 0.0
      %1826 = vmatpush1.msra.mxu0 0.0
      %1827 = vmatprep.subr.mxu0 0.0
      %1828 = vmatpush1.msra.mxu0 0.0
      %1829 = vmatprep.subr.mxu0 0.0
      %1830 = vmatpush1.msra.mxu0 0.0
      %1831 = vmatprep.subr.mxu0 0.0
      %1832 = vmatpush1.msra.mxu0 0.0
      %1833 = vmatprep.subr.mxu0 0.0
      %1834 = vmatpush1.msra.mxu0 0.0
      %1835 = vmatprep.subr.mxu0 0.0
      %1836 = vmatpush1.msra.mxu0 0.0
      %1837 = vmatprep.subr.mxu0 0.0
      %1838 = vmatpush1.msra.mxu0 0.0
      %1839 = vmatprep.subr.mxu0 0.0
      %1840 = vmatpush1.msra.mxu0 0.0
      %1841 = vmatprep.subr.mxu0 0.0
      %1842 = vmatpush1.msra.mxu0 0.0
      %1843 = vmatprep.subr.mxu0 0.0
      %1844 = vmatpush1.msra.mxu0 0.0
      %1845 = vmatprep.subr.mxu0 0.0
      %1846 = vmatpush1.msra.mxu0 0.0
      %1847 = vmatprep.subr.mxu0 0.0
      %1848 = vmatpush1.msra.mxu0 0.0
      %1849 = vmatprep.subr.mxu0 0.0
      %1850 = vmatpush1.msra.mxu0 0.0
      %1851 = vmatprep.subr.mxu0 0.0
      %1852 = vmatpush1.msra.mxu0 0.0
      %1853 = vmatprep.subr.mxu0 0.0
      %1854 = vmatpush1.msra.mxu0 0.0
      %1855 = vmatprep.subr.mxu0 0.0
      %1856 = vmatpush1.msra.mxu0 0.0
      %1857 = vmatprep.mubr.f32.mxu0 0.0
      %1858 = vmatmul.mubr.f32.gmra.mrb[0].mxu0 %v1770
      %v1859 = vpop.f32.mrb[0].mxu0
      %v1860 = vadd.f32 %v1731, %v1859
      %v1861 = vpop.f32.mrb[0].mxu0
      %1862 = vmatprep.mubr.f32.mxu0 0.0
      %1863 = vmatmul.mubr.f32.gmra.mrb[0].mxu0 %v1773
      %v1864 = vpop.f32.mrb[0].mxu0
      %v1865 = vadd.f32 %v1736, %v1864
      %v1866 = vpop.f32.mrb[0].mxu0
      %1867 = vmatprep.mubr.f32.mxu0 0.0
      %1868 = vmatmul.mubr.f32.gmra.mrb[0].mxu0 %v1776
      %v1869 = vpop.f32.mrb[0].mxu0
      %v1870 = vadd.f32 %v1741, %v1869
      %v1871 = vpop.f32.mrb[0].mxu0
      %1872 = vmatprep.mubr.f32.mxu0 0.0
      %1873 = vmatmul.mubr.f32.gmra.mrb[0].mxu0 %v1779
      %v1874 = vpop.f32.mrb[0].mxu0
      %v1875 = vadd.f32 %v1746, %v1874
      %v1876 = vpop.f32.mrb[0].mxu0
      %1877 = vmatprep.mubr.f32.mxu0 0.0
      %1878 = vmatmul.mubr.f32.gmra.mrb[0].mxu0 %v1782
      %v1879 = vpop.f32.mrb[0].mxu0
      %v1880 = vadd.f32 %v1751, %v1879
      %v1881 = vpop.f32.mrb[0].mxu0
      %1882 = vmatprep.mubr.f32.mxu0 0.0
      %1883 = vmatmul.mubr.f32.gmra.mrb[0].mxu0 %v1785
      %v1884 = vpop.f32.mrb[0].mxu0
      %v1885 = vadd.f32 %v1756, %v1884
      %v1886 = vpop.f32.mrb[0].mxu0
      %1887 = vmatprep.mubr.f32.mxu0 0.0
      %1888 = vmatmul.mubr.f32.gmra.mrb[0].mxu0 %v1788
      %v1889 = vpop.f32.mrb[0].mxu0
      %v1890 = vadd.f32 %v1761, %v1889
      %v1891 = vpop.f32.mrb[0].mxu0
      %1892 = vmatprep.mubr.f32.mxu0 0.0
      %1893 = vmatmul.mubr.f32.gmra.mrb[0].mxu0 %v1791
      %v1894 = vpop.f32.mrb[0].mxu0
      %v1895 = vadd.f32 %v1766, %v1894
      %v1896 = vpop.f32.mrb[0].mxu0
      %1897 = vdwg.mxu0
      %v1898 = vld [vmem:[%s8] sm:$0xff]
      %v1899 = vld [vmem:[%s8 + $0x8] sm:$0xff]
      %v1900 = vld [vmem:[%s8 + $0x10] sm:$0xff]
      %v1901 = vld [vmem:[%s8 + $0x18] sm:$0xff]
      %v1902 = vld [vmem:[%s8 + $0x20] sm:$0xff]
      %v1903 = vld [vmem:[%s8 + $0x28] sm:$0xff]
      %v1904 = vld [vmem:[%s8 + $0x30] sm:$0xff]
      %v1905 = vld [vmem:[%s8 + $0x38] sm:$0xff]
      %1907 = vset.pattern.permute.xlu0 0
      %1908 = vperm.xlu0 %1907, %v1898
      %v1909 = vpop.permute.xlu0 %1908
      %1912 = vset.pattern.permute.xlu0 0
      %1913 = vperm.xlu0 %1912, %v1899
      %v1914 = vpop.permute.xlu0 %1913
      %1917 = vset.pattern.permute.xlu0 0
      %1918 = vperm.xlu0 %1917, %v1900
      %v1919 = vpop.permute.xlu0 %1918
      %1922 = vset.pattern.permute.xlu0 0
      %1923 = vperm.xlu0 %1922, %v1901
      %v1924 = vpop.permute.xlu0 %1923
      %1927 = vset.pattern.permute.xlu0 0
      %1928 = vperm.xlu0 %1927, %v1902
      %v1929 = vpop.permute.xlu0 %1928
      %1932 = vset.pattern.permute.xlu0 0
      %1933 = vperm.xlu0 %1932, %v1903
      %v1934 = vpop.permute.xlu0 %1933
      %1937 = vset.pattern.permute.xlu0 0
      %1938 = vperm.xlu0 %1937, %v1904
      %v1939 = vpop.permute.xlu0 %1938
      %1942 = vset.pattern.permute.xlu0 0
      %1943 = vperm.xlu0 %1942, %v1905
      %v1944 = vpop.permute.xlu0 %1943
      %v1946 = vadd.f32 %v1860, %v1909
      %v1947 = vadd.f32 %v1865, %v1914
      %v1948 = vadd.f32 %v1870, %v1919
      %v1949 = vadd.f32 %v1875, %v1924
      %v1950 = vadd.f32 %v1880, %v1929
      %v1951 = vadd.f32 %v1885, %v1934
      %v1952 = vadd.f32 %v1890, %v1939
      %v1953 = vadd.f32 %v1895, %v1944
      %v1954 = vsel %vm854, %v1946, 0.0
      %1955 = vadd.xlane.f32.xlu0 %v1954
      %v1956 = vpop.xlane.xlu0 %1955
      %v1957 = vsel %vm854, %v1947, 0.0
      %1958 = vadd.xlane.f32.xlu0 %v1957
      %v1959 = vpop.xlane.xlu0 %1958
      %v1960 = vsel %vm854, %v1948, 0.0
      %1961 = vadd.xlane.f32.xlu0 %v1960
      %v1962 = vpop.xlane.xlu0 %1961
      %v1963 = vsel %vm854, %v1949, 0.0
      %1964 = vadd.xlane.f32.xlu0 %v1963
      %v1965 = vpop.xlane.xlu0 %1964
      %v1966 = vsel %vm854, %v1950, 0.0
      %1967 = vadd.xlane.f32.xlu0 %v1966
      %v1968 = vpop.xlane.xlu0 %1967
      %v1969 = vsel %vm854, %v1951, 0.0
      %1970 = vadd.xlane.f32.xlu0 %v1969
      %v1971 = vpop.xlane.xlu0 %1970
      %v1972 = vsel %vm854, %v1952, 0.0
      %1973 = vadd.xlane.f32.xlu0 %v1972
      %v1974 = vpop.xlane.xlu0 %1973
      %v1975 = vsel %vm854, %v1953, 0.0
      %1976 = vadd.xlane.f32.xlu0 %v1975
      %v1977 = vpop.xlane.xlu0 %1976
      %v1978 = vrcp.pop 8.0
      %v1979 = vmul.f32 %v1956, %v1978
      %v1980 = vmul.f32 %v1959, %v1978
      %v1981 = vmul.f32 %v1962, %v1978
      %v1982 = vmul.f32 %v1965, %v1978
      %v1983 = vmul.f32 %v1968, %v1978
      %v1984 = vmul.f32 %v1971, %v1978
      %v1985 = vmul.f32 %v1974, %v1978
      %v1986 = vmul.f32 %v1977, %v1978
      %v1987 = vsub.f32 %v1946, %v1979
      %v1988 = vsub.f32 %v1947, %v1980
      %v1989 = vsub.f32 %v1948, %v1981
      %v1990 = vsub.f32 %v1949, %v1982
      %v1991 = vsub.f32 %v1950, %v1983
      %v1992 = vsub.f32 %v1951, %v1984
      %v1993 = vsub.f32 %v1952, %v1985
      %v1994 = vsub.f32 %v1953, %v1986
      %v1995 = vmul.f32 %v1987, %v1987
      %v1996 = vmul.f32 %v1988, %v1988
      %v1997 = vmul.f32 %v1989, %v1989
      %v1998 = vmul.f32 %v1990, %v1990
      %v1999 = vmul.f32 %v1991, %v1991
      %v2000 = vmul.f32 %v1992, %v1992
      %v2001 = vmul.f32 %v1993, %v1993
      %v2002 = vmul.f32 %v1994, %v1994
      %v2003 = vsel %vm854, %v1995, 0.0
      %2004 = vadd.xlane.f32.xlu0 %v2003
      %v2005 = vpop.xlane.xlu0 %2004
      %v2006 = vsel %vm854, %v1996, 0.0
      %2007 = vadd.xlane.f32.xlu0 %v2006
      %v2008 = vpop.xlane.xlu0 %2007
      %v2009 = vsel %vm854, %v1997, 0.0
      %2010 = vadd.xlane.f32.xlu0 %v2009
      %v2011 = vpop.xlane.xlu0 %2010
      %v2012 = vsel %vm854, %v1998, 0.0
      %2013 = vadd.xlane.f32.xlu0 %v2012
      %v2014 = vpop.xlane.xlu0 %2013
      %v2015 = vsel %vm854, %v1999, 0.0
      %2016 = vadd.xlane.f32.xlu0 %v2015
      %v2017 = vpop.xlane.xlu0 %2016
      %v2018 = vsel %vm854, %v2000, 0.0
      %2019 = vadd.xlane.f32.xlu0 %v2018
      %v2020 = vpop.xlane.xlu0 %2019
      %v2021 = vsel %vm854, %v2001, 0.0
      %2022 = vadd.xlane.f32.xlu0 %v2021
      %v2023 = vpop.xlane.xlu0 %2022
      %v2024 = vsel %vm854, %v2002, 0.0
      %2025 = vadd.xlane.f32.xlu0 %v2024
      %v2026 = vpop.xlane.xlu0 %2025
      %v2027 = vmul.f32 %v2005, %v1978
      %v2028 = vmul.f32 %v2008, %v1978
      %v2029 = vmul.f32 %v2011, %v1978
      %v2030 = vmul.f32 %v2014, %v1978
      %v2031 = vmul.f32 %v2017, %v1978
      %v2032 = vmul.f32 %v2020, %v1978
      %v2033 = vmul.f32 %v2023, %v1978
      %v2034 = vmul.f32 %v2026, %v1978
      %v2035 = vadd.f32 %v2027, 1e-05
      %v2036 = vadd.f32 %v2028, 1e-05
      %v2037 = vadd.f32 %v2029, 1e-05
      %v2038 = vadd.f32 %v2030, 1e-05
      %v2039 = vadd.f32 %v2031, 1e-05
      %v2040 = vadd.f32 %v2032, 1e-05
      %v2041 = vadd.f32 %v2033, 1e-05
      %v2042 = vadd.f32 %v2034, 1e-05
      %v2043 = vrsqrt.pop %v2035
      %v2044 = vrsqrt.pop %v2036
      %v2045 = vrsqrt.pop %v2037
      %v2046 = vrsqrt.pop %v2038
      %v2047 = vrsqrt.pop %v2039
      %v2048 = vrsqrt.pop %v2040
      %v2049 = vrsqrt.pop %v2041
      %v2050 = vrsqrt.pop %v2042
      %v2051 = vmul.f32 %v1987, %v2043
      %v2052 = vmul.f32 %v1988, %v2044
      %v2053 = vmul.f32 %v1989, %v2045
      %v2054 = vmul.f32 %v1990, %v2046
      %v2055 = vmul.f32 %v1991, %v2047
      %v2056 = vmul.f32 %v1992, %v2048
      %v2057 = vmul.f32 %v1993, %v2049
      %v2058 = vmul.f32 %v1994, %v2050
      %v2059 = vmax.f32 %v2051, 0.0
      %v2060 = vmax.f32 %v2052, 0.0
      %v2061 = vmax.f32 %v2053, 0.0
      %v2062 = vmax.f32 %v2054, 0.0
      %v2063 = vmax.f32 %v2055, 0.0
      %v2064 = vmax.f32 %v2056, 0.0
      %v2065 = vmax.f32 %v2057, 0.0
      %v2066 = vmax.f32 %v2058, 0.0
      %v2067 = vld [vmem:[%s9] sm:$0xff]
      %v2068 = vld [vmem:[%s9 + $0x8] sm:$0xff]
      %v2069 = vld [vmem:[%s9 + $0x10] sm:$0xff]
      %v2070 = vld [vmem:[%s9 + $0x18] sm:$0xff]
      %v2071 = vld [vmem:[%s10] sm:$0xff]
      %v2072 = vld [vmem:[%s10 + $0x8] sm:$0xff]
      %v2073 = vld [vmem:[%s10 + $0x10] sm:$0xff]
      %v2074 = vld [vmem:[%s10 + $0x18] sm:$0xff]
      %2076 = vset.pattern.permute.xlu0 0
      %2077 = vperm.xlu0 %2076, %v2071
      %v2078 = vpop.permute.xlu0 %2077
      %2081 = vset.pattern.permute.xlu0 0
      %2082 = vperm.xlu0 %2081, %v2072
      %v2083 = vpop.permute.xlu0 %2082
      %2086 = vset.pattern.permute.xlu0 0
      %2087 = vperm.xlu0 %2086, %v2073
      %v2088 = vpop.permute.xlu0 %2087
      %2091 = vset.pattern.permute.xlu0 0
      %2092 = vperm.xlu0 %2091, %v2074
      %v2093 = vpop.permute.xlu0 %2092
      %vm2095 = vcmask 523264
      %v2097 = vsel %vm2095, %v2067, 0
      %v2100 = vsel %vm2095, %v2068, 0
      %v2103 = vsel %vm2095, %v2069, 0
      %v2106 = vsel %vm2095, %v2070, 0
      %2108 = vmatprep.subr.mxu0 0.0
      %2109 = vmatpush1.msra.mxu0 %v2059
      %2110 = vmatprep.subr.mxu0 0.0
      %2111 = vmatpush1.msra.mxu0 %v2060
      %2112 = vmatprep.subr.mxu0 0.0
      %2113 = vmatpush1.msra.mxu0 %v2061
      %2114 = vmatprep.subr.mxu0 0.0
      %2115 = vmatpush1.msra.mxu0 %v2062
      %2116 = vmatprep.subr.mxu0 0.0
      %2117 = vmatpush1.msra.mxu0 %v2063
      %2118 = vmatprep.subr.mxu0 0.0
      %2119 = vmatpush1.msra.mxu0 %v2064
      %2120 = vmatprep.subr.mxu0 0.0
      %2121 = vmatpush1.msra.mxu0 %v2065
      %2122 = vmatprep.subr.mxu0 0.0
      %2123 = vmatpush1.msra.mxu0 %v2066
      %2124 = vmatprep.subr.mxu0 0.0
      %2125 = vmatpush1.msra.mxu0 0.0
      %2126 = vmatprep.subr.mxu0 0.0
      %2127 = vmatpush1.msra.mxu0 0.0
      %2128 = vmatprep.subr.mxu0 0.0
      %2129 = vmatpush1.msra.mxu0 0.0
      %2130 = vmatprep.subr.mxu0 0.0
      %2131 = vmatpush1.msra.mxu0 0.0
      %2132 = vmatprep.subr.mxu0 0.0
      %2133 = vmatpush1.msra.mxu0 0.0
      %2134 = vmatprep.subr.mxu0 0.0
      %2135 = vmatpush1.msra.mxu0 0.0
      %2136 = vmatprep.subr.mxu0 0.0
      %2137 = vmatpush1.msra.mxu0 0.0
      %2138 = vmatprep.subr.mxu0 0.0
      %2139 = vmatpush1.msra.mxu0 0.0
      %2140 = vmatprep.subr.mxu0 0.0
      %2141 = vmatpush1.msra.mxu0 0.0
      %2142 = vmatprep.subr.mxu0 0.0
      %2143 = vmatpush1.msra.mxu0 0.0
      %2144 = vmatprep.subr.mxu0 0.0
      %2145 = vmatpush1.msra.mxu0 0.0
      %2146 = vmatprep.subr.mxu0 0.0
      %2147 = vmatpush1.msra.mxu0 0.0
      %2148 = vmatprep.subr.mxu0 0.0
      %2149 = vmatpush1.msra.mxu0 0.0
      %2150 = vmatprep.subr.mxu0 0.0
      %2151 = vmatpush1.msra.mxu0 0.0
      %2152 = vmatprep.subr.mxu0 0.0
      %2153 = vmatpush1.msra.mxu0 0.0
      %2154 = vmatprep.subr.mxu0 0.0
      %2155 = vmatpush1.msra.mxu0 0.0
      %2156 = vmatprep.subr.mxu0 0.0
      %2157 = vmatpush1.msra.mxu0 0.0
      %2158 = vmatprep.subr.mxu0 0.0
      %2159 = vmatpush1.msra.mxu0 0.0
      %2160 = vmatprep.subr.mxu0 0.0
      %2161 = vmatpush1.msra.mxu0 0.0
      %2162 = vmatprep.subr.mxu0 0.0
      %2163 = vmatpush1.msra.mxu0 0.0
      %2164 = vmatprep.subr.mxu0 0.0
      %2165 = vmatpush1.msra.mxu0 0.0
      %2166 = vmatprep.subr.mxu0 0.0
      %2167 = vmatpush1.msra.mxu0 0.0
      %2168 = vmatprep.subr.mxu0 0.0
      %2169 = vmatpush1.msra.mxu0 0.0
      %2170 = vmatprep.subr.mxu0 0.0
      %2171 = vmatpush1.msra.mxu0 0.0
      %2172 = vmatprep.mubr.f32.mxu0 0.0
      %2173 = vmatmul.mubr.f32.gmra.mrb[0].mxu0 %v2097
      %v2174 = vpop.f32.mrb[0].mxu0
      %v2175 = vadd.f32 %v2078, %v2174
      %v2176 = vpop.f32.mrb[0].mxu0
      %2177 = vmatprep.mubr.f32.mxu0 0.0
      %2178 = vmatmul.mubr.f32.gmra.mrb[0].mxu0 %v2100
      %v2179 = vpop.f32.mrb[0].mxu0
      %v2180 = vadd.f32 %v2083, %v2179
      %v2181 = vpop.f32.mrb[0].mxu0
      %2182 = vmatprep.mubr.f32.mxu0 0.0
      %2183 = vmatmul.mubr.f32.gmra.mrb[0].mxu0 %v2103
      %v2184 = vpop.f32.mrb[0].mxu0
      %v2185 = vadd.f32 %v2088, %v2184
      %v2186 = vpop.f32.mrb[0].mxu0
      %2187 = vmatprep.mubr.f32.mxu0 0.0
      %2188 = vmatmul.mubr.f32.gmra.mrb[0].mxu0 %v2106
      %v2189 = vpop.f32.mrb[0].mxu0
      %v2190 = vadd.f32 %v2093, %v2189
      %v2191 = vpop.f32.mrb[0].mxu0
      %2192 = vdwg.mxu0
      %2193 = vst.msk [vmem:[%s406] sm:$0xff] %vm854, %v2175
      %2194 = vst.msk [vmem:[%s406 + $0x8] sm:$0xff] %vm854, %v2180
      %2195 = vst.msk [vmem:[%s406 + $0x10] sm:$0xff] %vm854, %v2185
      %2196 = vst.msk [vmem:[%s406 + $0x18] sm:$0xff] %vm854, %v2190
      %p2197 = scmp.lt.s32.totalorder %s22, 1
      %s2198 = scalar_select %p2197, %s22, 1
      %s2199 = smul.addr %s2198, 4
      %s2200 = smul.addr %s2199, 8
      %s2201 = scalar_lea.vmem %s11, %s2200
      // Predicated region
      $region65: #{tpu_custom_call.1} parent=63 // pred_check
        %p2202 = pneg %p281
      $region66: #{tpu_custom_call.1} parent=63 // pred_check_branch
        %2204 = sbr.rel (%p2202) target = $region68
      $region67: #{tpu_custom_call.1} parent=63 // pred_region
        _
      $region68: #{tpu_custom_call.1} parent=63 // pred_fallthru
        _
    $region64: #{tpu_custom_call.1} parent=5 // pred_fallthru
      _
    %p2205 = scmp.le.s32.totalorder 2, %s17
    // Predicated region
    $region69: #{tpu_custom_call.1} parent=5 // pred_check
      %p2206 = pneg %p2205
    $region70: #{tpu_custom_call.1} parent=5 // pred_check_branch
      %2208 = sbr.rel (%p2206) target = $region72
    $region71: #{tpu_custom_call.1} parent=5 // pred_region
      %s2209 = ssub.s32 %s17, 2
      // Predicated region
      $region73: #{tpu_custom_call.1} parent=71 // pred_check
        %p2210 = pneg %p287
      $region74: #{tpu_custom_call.1} parent=71 // pred_check_branch
        %2212 = sbr.rel (%p2210) target = $region76
      $region75: #{tpu_custom_call.1} parent=71 // pred_region
        %p2213 = scmp.lt.s32.totalorder %s23, 1
        %s2214 = scalar_select %p2213, %s23, 1
        %s2215 = smul.addr %s2214, 4
        %s2216 = smul.addr %s2215, 8
        %s2217 = scalar_lea.vmem %s11, %s2216
      $region76: #{tpu_custom_call.1} parent=71 // pred_fallthru
        _
    $region72: #{tpu_custom_call.1} parent=5 // pred_fallthru
      _
  $region6: #{tpu_custom_call.1} parent=0 // loop_footer
    %s21 = sadd.s32 1, %s17
  $region7: #{tpu_custom_call.1} parent=0 // loop_footer_branch
    %16 = sbr.rel target = $region3
  $region8: #{tpu_custom_call.1} parent=0 // loop_exit
    _

</llo_original>
